<compile_context>
chip_gen: v7x
topology: tpu7x:2x2x1
jax: 0.10.0
libtpu: 0.0.40
codegen_flags: <defaults>
</compile_context>

<pallas_src>
import functools

import jax
import jax.numpy as jnp
import numpy as np
from jax.experimental import pallas as pl
from jax.experimental.pallas import tpu as pltpu


def _contract_kernel_xlu(x_ref, o_ref, t_ref, *, gain):
    """Relayout-only kernel: strided sublane picks + XLU transposes, no MXU.

    x_ref: (C, block_h2 * s, W)    dense NCHW rows of the current strip
    o_ref: (C * s * s, block_h2, W2)
    t_ref: (C, W, block_h2)        VMEM scratch: one transposed s1-plane
    """
    s = gain
    C, R, W = x_ref.shape
    th2 = R // s
    w2 = W // s

    for s1 in range(s):
        # Rows h = s*h2 + s1: a sublane-strided pick straight from the block.
        plane = x_ref[:, pl.ds(s1, th2, stride=s), :].astype(t_ref.dtype)
        # Put W on the sublane axis so the w-phase pick is also sublane-strided.
        t_ref[...] = jnp.swapaxes(plane, 1, 2)                 # (C, W, th2)
        for s2 in range(s):
            sub = t_ref[:, pl.ds(s2, w2, stride=s), :]          # (C, w2, th2)
            co = (s1 * s + s2) * C
            # NOTE: when W2 < 128 this store is lane-masked; a flattened
            # (th2*w2)-lane store would need an in-kernel minor-dim merge,
            # which we deliberately avoid for lowering robustness.
            o_ref[pl.ds(co, C), :, :] = (
                jnp.swapaxes(sub, 1, 2).astype(o_ref.dtype))    # (C, th2, w2)


def _contract_kernel_mxu(x_ref, o_ref, *, gain):
    """Fallback: exact 0/1 selection matmul (previous formulation, selectors hoisted).

    x_ref: (C, block_h2, s, W)   o_ref: (C * s * s, block_h2, W2)
    """
    s = gain
    C, th2, _, W = x_ref.shape
    w2 = W // s
    w_idx = jax.lax.broadcasted_iota(jnp.int32, (W, w2), 0)
    v_idx = jax.lax.broadcasted_iota(jnp.int32, (W, w2), 1)
    sels = [(w_idx == s * v_idx + s2).astype(jnp.float32) for s2 in range(s)]
    for s1 in range(s):
        slab = x_ref[:, :, s1, :].reshape(C * th2, W).astype(jnp.float32)
        for s2 in range(s):
            grp = jnp.dot(slab, sels[s2], preferred_element_type=jnp.float32)
            co = (s1 * s + s2) * C
            o_ref[pl.ds(co, C), :, :] = grp.reshape(C, th2, w2).astype(o_ref.dtype)


def _pick_block_h2(N, C, H2, W, s, itemsize, budget_bytes=4 << 20):
    """Largest 8-aligned divisor of H2 whose (in + out) strip fits the budget."""
    cands = sorted({H2} | {d for d in range(8, H2 + 1, 8) if H2 % d == 0})
    per_strip = lambda bh: 2 * C * s * bh * W * itemsize      # in block + out block
    fitting = [d for d in cands if per_strip(d) <= budget_bytes]
    bh = max(fitting) if fitting else min(cands)
    # v7x has 2 TensorCores; keep >= 2 grid steps when the batch axis can't.
    if N == 1 and bh == H2:
        smaller = [d for d in cands if d < H2]
        if smaller:
            bh = max(smaller)
    return bh


def contract_forward(x, gain=2, block_h2=None):
    """Contract forward: (N, C, H, W) -> (N, C*gain^2, H//gain, W//gain), NCHW."""
    N, C, H, W = x.shape
    s = int(gain)
    assert H % s == 0 and W % s == 0, "H and W must be divisible by gain"
    H2, W2 = H // s, W // s
    itemsize = jnp.dtype(x.dtype).itemsize
    # 32-bit types are relaid out natively; narrower types go through f32
    # (exact for bf16/f16) so the transposes stay on well-supported layouts.
    cdt = x.dtype if itemsize == 4 else jnp.float32

    if block_h2 is None:
        block_h2 = _pick_block_h2(N, C, H2, W, s, itemsize)
    assert H2 % block_h2 == 0
    assert block_h2 == H2 or block_h2 % 8 == 0, "strip height must be 8-aligned"

    grid = (N, H2 // block_h2)
    out_shape = jax.ShapeDtypeStruct((N, C * s * s, H2, W2), x.dtype)
    out_spec = pl.BlockSpec((None, C * s * s, block_h2, W2),
                            lambda n, t: (n, 0, t, 0))
    # Pure data movement: tell XLA this call is memory-bound (0 FLOPs).
    cost = pl.CostEstimate(flops=0, transcendentals=0,
                           bytes_accessed=2 * N * C * H * W * itemsize)
    strip_bytes = 2 * C * s * block_h2 * W * itemsize
    scratch_bytes = C * W * block_h2 * jnp.dtype(cdt).itemsize
    vmem_limit = int(min(56 << 20,
                         max(32 << 20, 3 * strip_bytes + scratch_bytes + (4 << 20))))
    cparams = pltpu.CompilerParams(
        dimension_semantics=("parallel", "parallel"),
        vmem_limit_bytes=vmem_limit)

    def run_relayout():
        in_spec = pl.BlockSpec((None, C, block_h2 * s, W),
                               lambda n, t: (n, 0, t, 0))
        return pl.pallas_call(
            functools.partial(_contract_kernel_xlu, gain=s),
            out_shape=out_shape,
            grid=grid,
            in_specs=[in_spec],
            out_specs=out_spec,
            scratch_shapes=[pltpu.VMEM((C, W, block_h2), cdt)],
            compiler_params=cparams,
            cost_estimate=cost,
        )(x)

    def run_matmul_fallback():
        x5 = x.reshape(N, C, H2, s, W)          # free contiguous view
        in_spec = pl.BlockSpec((None, C, block_h2, s, W),
                               lambda n, t: (n, 0, t, 0, 0))
        return pl.pallas_call(
            functools.partial(_contract_kernel_mxu, gain=s),
            out_shape=out_shape,
            grid=grid,
            in_specs=[in_spec],
            out_specs=out_spec,
            compiler_params=cparams,
            cost_estimate=cost,
        )(x5)

    try:
        return jax.block_until_ready(run_relayout())
    except Exception:
        # Only taken on Mosaic builds lacking strided ref loads / minor-dim
        # transposes; keeps the script runnable (exact, but MXU-based).
        return jax.block_until_ready(run_matmul_fallback())


def _reference_contract(x, gain=2):
    """Pure-JAX reference, mirrors the PyTorch module exactly."""
    N, C, H, W = x.shape
    s = gain
    x6 = x.reshape(N, C, H // s, s, W // s, s)
    x6 = jnp.transpose(x6, (0, 3, 5, 1, 2, 4))
    return x6.reshape(N, C * s * s, H // s, W // s)


if __name__ == "__main__":
    # Contract(gain=2) on a small deterministic NCHW input.
    N, C, H, W = 2, 4, 16, 16
    gain = 2

    key = jax.random.PRNGKey(0)
    x = jax.random.normal(key, (N, C, H, W), dtype=jnp.float32)

    out = contract_forward(x, gain=gain)
    out = jax.block_until_ready(out)

    ref = _reference_contract(x, gain=gain)
    assert out.shape == (N, C * gain * gain, H // gain, W // gain)
    np.testing.assert_allclose(np.asarray(out), np.asarray(ref),
                               rtol=0.0, atol=1e-6)

    print("KERNEL_OK")
</pallas_src>

<mosaic_0001>
module attributes {stable_mosaic.version = 11 : i64} {
  func.func @_contract_kernel_xlu(%arg0: i32, %arg1: i32, %arg2: memref<1x4x16x16xf32, #tpu.memory_space<vmem>>, %arg3: memref<1x16x8x8xf32, #tpu.memory_space<vmem>>, %arg4: memref<4x16x8xf32, #tpu.memory_space<vmem>>) attributes {dimension_semantics = [#tpu.dimension_semantics<parallel>, #tpu.dimension_semantics<parallel>], iteration_bounds = array<i64: 2, 1>, scalar_prefetch = 0 : i64, scratch_operands = 1 : i64, tpu.core_type = #tpu.core_type<tc>, window_params = [{transform_indices = @transform_0, window_bounds = array<i64: 1, 4, 16, 16>}, {transform_indices = @transform_1, window_bounds = array<i64: 1, 16, 8, 8>}]} {
    %c0 = arith.constant 0 : index
    %c0_0 = arith.constant 0 : index
    %c0_1 = arith.constant 0 : index
    %c0_2 = arith.constant 0 : index
    %0 = tpu.strided_load %arg2[%c0, %c0_0, %c0_1, %c0_2] {strides = array<i32: 1, 1, 2, 1>} : memref<1x4x16x16xf32, #tpu.memory_space<vmem>>, vector<1x4x8x16xf32>
    %1 = vector.shape_cast %0 : vector<1x4x8x16xf32> to vector<4x8x16xf32>
    %2 = tpu.transpose %1, [0, 2, 1] : vector<4x8x16xf32> -> vector<4x16x8xf32>
    %c0_3 = arith.constant 0 : index
    %c0_4 = arith.constant 0 : index
    %c0_5 = arith.constant 0 : index
    %3 = vector.load %arg4[%c0_3, %c0_4, %c0_5] : memref<4x16x8xf32, #tpu.memory_space<vmem>>, vector<4x16x8xf32>
    tpu.vector_store %arg4[%c0_3, %c0_4, %c0_5], %2 {strides = array<i32>} : memref<4x16x8xf32, #tpu.memory_space<vmem>>, vector<4x16x8xf32>,
    %c0_6 = arith.constant 0 : index
    %c0_7 = arith.constant 0 : index
    %c0_8 = arith.constant 0 : index
    %4 = tpu.strided_load %arg4[%c0_6, %c0_7, %c0_8] {strides = array<i32: 1, 2, 1>} : memref<4x16x8xf32, #tpu.memory_space<vmem>>, vector<4x8x8xf32>
    %5 = tpu.transpose %4, [0, 2, 1] : vector<4x8x8xf32> -> vector<4x8x8xf32>
    %c0_9 = arith.constant 0 : index
    %c0_10 = arith.constant 0 : index
    %c0_11 = arith.constant 0 : index
    %c0_12 = arith.constant 0 : index
    %6 = vector.load %arg3[%c0_9, %c0_10, %c0_11, %c0_12] : memref<1x16x8x8xf32, #tpu.memory_space<vmem>>, vector<1x4x8x8xf32>
    %7 = vector.shape_cast %6 : vector<1x4x8x8xf32> to vector<4x8x8xf32>
    %8 = vector.shape_cast %5 : vector<4x8x8xf32> to vector<1x4x8x8xf32>
    tpu.vector_store %arg3[%c0_9, %c0_10, %c0_11, %c0_12], %8 {strides = array<i32>} : memref<1x16x8x8xf32, #tpu.memory_space<vmem>>, vector<1x4x8x8xf32>,
    %c0_13 = arith.constant 0 : index
    %c1 = arith.constant 1 : index
    %c0_14 = arith.constant 0 : index
    %9 = tpu.strided_load %arg4[%c0_13, %c1, %c0_14] {strides = array<i32: 1, 2, 1>} : memref<4x16x8xf32, #tpu.memory_space<vmem>>, vector<4x8x8xf32>
    %10 = tpu.transpose %9, [0, 2, 1] : vector<4x8x8xf32> -> vector<4x8x8xf32>
    %c0_15 = arith.constant 0 : index
    %c4 = arith.constant 4 : index
    %c0_16 = arith.constant 0 : index
    %c0_17 = arith.constant 0 : index
    %11 = vector.load %arg3[%c0_15, %c4, %c0_16, %c0_17] : memref<1x16x8x8xf32, #tpu.memory_space<vmem>>, vector<1x4x8x8xf32>
    %12 = vector.shape_cast %11 : vector<1x4x8x8xf32> to vector<4x8x8xf32>
    %13 = vector.shape_cast %10 : vector<4x8x8xf32> to vector<1x4x8x8xf32>
    tpu.vector_store %arg3[%c0_15, %c4, %c0_16, %c0_17], %13 {strides = array<i32>} : memref<1x16x8x8xf32, #tpu.memory_space<vmem>>, vector<1x4x8x8xf32>,
    %c0_18 = arith.constant 0 : index
    %c0_19 = arith.constant 0 : index
    %c1_20 = arith.constant 1 : index
    %c0_21 = arith.constant 0 : index
    %14 = tpu.strided_load %arg2[%c0_18, %c0_19, %c1_20, %c0_21] {strides = array<i32: 1, 1, 2, 1>} : memref<1x4x16x16xf32, #tpu.memory_space<vmem>>, vector<1x4x8x16xf32>
    %15 = vector.shape_cast %14 : vector<1x4x8x16xf32> to vector<4x8x16xf32>
    %16 = tpu.transpose %15, [0, 2, 1] : vector<4x8x16xf32> -> vector<4x16x8xf32>
    %c0_22 = arith.constant 0 : index
    %c0_23 = arith.constant 0 : index
    %c0_24 = arith.constant 0 : index
    %17 = vector.load %arg4[%c0_22, %c0_23, %c0_24] : memref<4x16x8xf32, #tpu.memory_space<vmem>>, vector<4x16x8xf32>
    tpu.vector_store %arg4[%c0_22, %c0_23, %c0_24], %16 {strides = array<i32>} : memref<4x16x8xf32, #tpu.memory_space<vmem>>, vector<4x16x8xf32>,
    %c0_25 = arith.constant 0 : index
    %c0_26 = arith.constant 0 : index
    %c0_27 = arith.constant 0 : index
    %18 = tpu.strided_load %arg4[%c0_25, %c0_26, %c0_27] {strides = array<i32: 1, 2, 1>} : memref<4x16x8xf32, #tpu.memory_space<vmem>>, vector<4x8x8xf32>
    %19 = tpu.transpose %18, [0, 2, 1] : vector<4x8x8xf32> -> vector<4x8x8xf32>
    %c0_28 = arith.constant 0 : index
    %c8 = arith.constant 8 : index
    %c0_29 = arith.constant 0 : index
    %c0_30 = arith.constant 0 : index
    %20 = vector.load %arg3[%c0_28, %c8, %c0_29, %c0_30] : memref<1x16x8x8xf32, #tpu.memory_space<vmem>>, vector<1x4x8x8xf32>
    %21 = vector.shape_cast %20 : vector<1x4x8x8xf32> to vector<4x8x8xf32>
    %22 = vector.shape_cast %19 : vector<4x8x8xf32> to vector<1x4x8x8xf32>
    tpu.vector_store %arg3[%c0_28, %c8, %c0_29, %c0_30], %22 {strides = array<i32>} : memref<1x16x8x8xf32, #tpu.memory_space<vmem>>, vector<1x4x8x8xf32>,
    %c0_31 = arith.constant 0 : index
    %c1_32 = arith.constant 1 : index
    %c0_33 = arith.constant 0 : index
    %23 = tpu.strided_load %arg4[%c0_31, %c1_32, %c0_33] {strides = array<i32: 1, 2, 1>} : memref<4x16x8xf32, #tpu.memory_space<vmem>>, vector<4x8x8xf32>
    %24 = tpu.transpose %23, [0, 2, 1] : vector<4x8x8xf32> -> vector<4x8x8xf32>
    %c0_34 = arith.constant 0 : index
    %c12 = arith.constant 12 : index
    %c0_35 = arith.constant 0 : index
    %c0_36 = arith.constant 0 : index
    %25 = vector.load %arg3[%c0_34, %c12, %c0_35, %c0_36] : memref<1x16x8x8xf32, #tpu.memory_space<vmem>>, vector<1x4x8x8xf32>
    %26 = vector.shape_cast %25 : vector<1x4x8x8xf32> to vector<4x8x8xf32>
    %27 = vector.shape_cast %24 : vector<4x8x8xf32> to vector<1x4x8x8xf32>
    tpu.vector_store %arg3[%c0_34, %c12, %c0_35, %c0_36], %27 {strides = array<i32>} : memref<1x16x8x8xf32, #tpu.memory_space<vmem>>, vector<1x4x8x8xf32>,
    return
  }
  func.func @transform_0(%arg0: i32, %arg1: i32) -> (i32, i32, i32, i32) {
    %c0_i32 = arith.constant 0 : i32
    %c0_i32_0 = arith.constant 0 : i32
    %c0_i32_1 = arith.constant 0 : i32
    return %arg0, %c0_i32, %arg1, %c0_i32_0 : i32, i32, i32, i32
  }
  func.func @transform_1(%arg0: i32, %arg1: i32) -> (i32, i32, i32, i32) {
    %c0_i32 = arith.constant 0 : i32
    %c0_i32_0 = arith.constant 0 : i32
    %c0_i32_1 = arith.constant 0 : i32
    return %arg0, %c0_i32, %arg1, %c0_i32_0 : i32, i32, i32, i32
  }
}

module attributes {stable_mosaic.version = 11 : i64} {
  func.func @_contract_kernel_mxu(%arg0: i32, %arg1: i32, %arg2: memref<1x4x8x2x16xf32, #tpu.memory_space<vmem>>, %arg3: memref<1x16x8x8xf32, #tpu.memory_space<vmem>>) attributes {dimension_semantics = [#tpu.dimension_semantics<parallel>, #tpu.dimension_semantics<parallel>], iteration_bounds = array<i64: 2, 1>, scalar_prefetch = 0 : i64, scratch_operands = 0 : i64, tpu.core_type = #tpu.core_type<tc>, window_params = [{transform_indices = @transform_0, window_bounds = array<i64: 1, 4, 8, 2, 16>}, {transform_indices = @transform_1, window_bounds = array<i64: 1, 16, 8, 8>}]} {
    %0 = tpu.iota {dimensions = array<i32: 0>} : vector<16x8xi32>
    %1 = tpu.iota {dimensions = array<i32: 1>} : vector<16x8xi32>
    %c2_i32 = arith.constant 2 : i32
    %2 = vector.broadcast %c2_i32 : i32 to vector<16x8xi32>
    %3 = arith.muli %2, %1 : vector<16x8xi32>
    %c0_i32 = arith.constant 0 : i32
    %4 = vector.broadcast %c0_i32 : i32 to vector<16x8xi32>
    %5 = arith.addi %3, %4 : vector<16x8xi32>
    %6 = arith.cmpi eq, %0, %5 : vector<16x8xi32>
    %7 = arith.extui %6 : vector<16x8xi1> to vector<16x8xi32>
    %8 = arith.sitofp %7 : vector<16x8xi32> to vector<16x8xf32>
    %c2_i32_0 = arith.constant 2 : i32
    %9 = vector.broadcast %c2_i32_0 : i32 to vector<16x8xi32>
    %10 = arith.muli %9, %1 : vector<16x8xi32>
    %c1_i32 = arith.constant 1 : i32
    %11 = vector.broadcast %c1_i32 : i32 to vector<16x8xi32>
    %12 = arith.addi %10, %11 : vector<16x8xi32>
    %13 = arith.cmpi eq, %0, %12 : vector<16x8xi32>
    %14 = arith.extui %13 : vector<16x8xi1> to vector<16x8xi32>
    %15 = arith.sitofp %14 : vector<16x8xi32> to vector<16x8xf32>
    %c0 = arith.constant 0 : index
    %c0_1 = arith.constant 0 : index
    %c0_2 = arith.constant 0 : index
    %c0_3 = arith.constant 0 : index
    %c0_4 = arith.constant 0 : index
    %16 = vector.load %arg2[%c0, %c0_1, %c0_2, %c0_3, %c0_4] : memref<1x4x8x2x16xf32, #tpu.memory_space<vmem>>, vector<1x4x8x1x16xf32>
    %17 = vector.shape_cast %16 : vector<1x4x8x1x16xf32> to vector<4x8x16xf32>
    %18 = vector.shape_cast %17 : vector<4x8x16xf32> to vector<32x16xf32>
    %cst = arith.constant dense<0.000000e+00> : vector<32x8xf32>
    %19 = tpu.matmul %18, %8, %cst {dimension_numbers = #tpu.dot_dimension_numbers<[1], [0], [0], [1], [0, 0, 1, 1], [], []>} : vector<32x16xf32>, vector<16x8xf32>, vector<32x8xf32> -> vector<32x8xf32>
    %20 = vector.shape_cast %19 : vector<32x8xf32> to vector<4x8x8xf32>
    %c0_5 = arith.constant 0 : index
    %c0_6 = arith.constant 0 : index
    %c0_7 = arith.constant 0 : index
    %c0_8 = arith.constant 0 : index
    %21 = vector.load %arg3[%c0_5, %c0_6, %c0_7, %c0_8] : memref<1x16x8x8xf32, #tpu.memory_space<vmem>>, vector<1x4x8x8xf32>
    %22 = vector.shape_cast %21 : vector<1x4x8x8xf32> to vector<4x8x8xf32>
    %23 = vector.shape_cast %20 : vector<4x8x8xf32> to vector<1x4x8x8xf32>
    tpu.vector_store %arg3[%c0_5, %c0_6, %c0_7, %c0_8], %23 {strides = array<i32>} : memref<1x16x8x8xf32, #tpu.memory_space<vmem>>, vector<1x4x8x8xf32>,
    %cst_9 = arith.constant dense<0.000000e+00> : vector<32x8xf32>
    %24 = tpu.matmul %18, %15, %cst_9 {dimension_numbers = #tpu.dot_dimension_numbers<[1], [0], [0], [1], [0, 0, 1, 1], [], []>} : vector<32x16xf32>, vector<16x8xf32>, vector<32x8xf32> -> vector<32x8xf32>
    %25 = vector.shape_cast %24 : vector<32x8xf32> to vector<4x8x8xf32>
    %c0_10 = arith.constant 0 : index
    %c4 = arith.constant 4 : index
    %c0_11 = arith.constant 0 : index
    %c0_12 = arith.constant 0 : index
    %26 = vector.load %arg3[%c0_10, %c4, %c0_11, %c0_12] : memref<1x16x8x8xf32, #tpu.memory_space<vmem>>, vector<1x4x8x8xf32>
    %27 = vector.shape_cast %26 : vector<1x4x8x8xf32> to vector<4x8x8xf32>
    %28 = vector.shape_cast %25 : vector<4x8x8xf32> to vector<1x4x8x8xf32>
    tpu.vector_store %arg3[%c0_10, %c4, %c0_11, %c0_12], %28 {strides = array<i32>} : memref<1x16x8x8xf32, #tpu.memory_space<vmem>>, vector<1x4x8x8xf32>,
    %c0_13 = arith.constant 0 : index
    %c0_14 = arith.constant 0 : index
    %c0_15 = arith.constant 0 : index
    %c1 = arith.constant 1 : index
    %c0_16 = arith.constant 0 : index
    %29 = vector.load %arg2[%c0_13, %c0_14, %c0_15, %c1, %c0_16] : memref<1x4x8x2x16xf32, #tpu.memory_space<vmem>>, vector<1x4x8x1x16xf32>
    %30 = vector.shape_cast %29 : vector<1x4x8x1x16xf32> to vector<4x8x16xf32>
    %31 = vector.shape_cast %30 : vector<4x8x16xf32> to vector<32x16xf32>
    %cst_17 = arith.constant dense<0.000000e+00> : vector<32x8xf32>
    %32 = tpu.matmul %31, %8, %cst_17 {dimension_numbers = #tpu.dot_dimension_numbers<[1], [0], [0], [1], [0, 0, 1, 1], [], []>} : vector<32x16xf32>, vector<16x8xf32>, vector<32x8xf32> -> vector<32x8xf32>
    %33 = vector.shape_cast %32 : vector<32x8xf32> to vector<4x8x8xf32>
    %c0_18 = arith.constant 0 : index
    %c8 = arith.constant 8 : index
    %c0_19 = arith.constant 0 : index
    %c0_20 = arith.constant 0 : index
    %34 = vector.load %arg3[%c0_18, %c8, %c0_19, %c0_20] : memref<1x16x8x8xf32, #tpu.memory_space<vmem>>, vector<1x4x8x8xf32>
    %35 = vector.shape_cast %34 : vector<1x4x8x8xf32> to vector<4x8x8xf32>
    %36 = vector.shape_cast %33 : vector<4x8x8xf32> to vector<1x4x8x8xf32>
    tpu.vector_store %arg3[%c0_18, %c8, %c0_19, %c0_20], %36 {strides = array<i32>} : memref<1x16x8x8xf32, #tpu.memory_space<vmem>>, vector<1x4x8x8xf32>,
    %cst_21 = arith.constant dense<0.000000e+00> : vector<32x8xf32>
    %37 = tpu.matmul %31, %15, %cst_21 {dimension_numbers = #tpu.dot_dimension_numbers<[1], [0], [0], [1], [0, 0, 1, 1], [], []>} : vector<32x16xf32>, vector<16x8xf32>, vector<32x8xf32> -> vector<32x8xf32>
    %38 = vector.shape_cast %37 : vector<32x8xf32> to vector<4x8x8xf32>
    %c0_22 = arith.constant 0 : index
    %c12 = arith.constant 12 : index
    %c0_23 = arith.constant 0 : index
    %c0_24 = arith.constant 0 : index
    %39 = vector.load %arg3[%c0_22, %c12, %c0_23, %c0_24] : memref<1x16x8x8xf32, #tpu.memory_space<vmem>>, vector<1x4x8x8xf32>
    %40 = vector.shape_cast %39 : vector<1x4x8x8xf32> to vector<4x8x8xf32>
    %41 = vector.shape_cast %38 : vector<4x8x8xf32> to vector<1x4x8x8xf32>
    tpu.vector_store %arg3[%c0_22, %c12, %c0_23, %c0_24], %41 {strides = array<i32>} : memref<1x16x8x8xf32, #tpu.memory_space<vmem>>, vector<1x4x8x8xf32>,
    return
  }
  func.func @transform_0(%arg0: i32, %arg1: i32) -> (i32, i32, i32, i32, i32) {
    %c0_i32 = arith.constant 0 : i32
    %c0_i32_0 = arith.constant 0 : i32
    %c0_i32_1 = arith.constant 0 : i32
    %c0_i32_2 = arith.constant 0 : i32
    return %arg0, %c0_i32, %arg1, %c0_i32_0, %c0_i32_1 : i32, i32, i32, i32, i32
  }
  func.func @transform_1(%arg0: i32, %arg1: i32) -> (i32, i32, i32, i32) {
    %c0_i32 = arith.constant 0 : i32
    %c0_i32_0 = arith.constant 0 : i32
    %c0_i32_1 = arith.constant 0 : i32
    return %arg0, %c0_i32, %arg1, %c0_i32_0 : i32, i32, i32, i32
  }
}

</mosaic_0001>

<llo_original>
// kernel: tpu_custom_call.1
$region0: #{tpu_custom_call.1}
  #allocation0 [shape = 'u32[]', space=smem, size = 0x4, offset = 0x4, fixed_abs, tag = 'smem constant byte address 0x4 - core index']
  #allocation1 [shape = 'u32[144,128]{1,0:T(1,128)}', space=vmem, size = 0x12000, scoped, tag = 'internal scratch']
  #allocation2 [shape = 'f32[4,16,8]{2,1,0:T(8,128)}', space=vmem, size = 0x8000, scoped, tag = 'scratch operand']
  %s0 = inlined_call_operand.hbm [shape: f32[2,4,16,16], index: 0, kind: input, shape index: {}]
  %s1 = inlined_call_operand.vmem [shape: f32[2,16,8,8], index: 1, kind: output, shape index: {}]
  %s2 = sld [smem:[#allocation0]]
  $region41: #{tpu_custom_call.1} parent=0
    _
  %s4 = ssub.s32 1, %s2
  %s5 = scalar_select 0, %s4, %s2
  $region1: #{tpu_custom_call.1} parent=0
    #allocation3 [shape = 'u8[65536]{0}', space=vmem, size = 0x10000, scoped, tag = 'input window, operand 0']
    #allocation4 [shape = 's32[2]{0}', space=sflag, size = 0x8, scoped, tag = 'scoped memory for tpu_custom_call.1']
    %6 = vsyncpa [#allocation4], 0
    %s7 = scalar_lea.sflag [#allocation4], 1
    %8 = vsyncpa %s7, 0
    loop: start=0, step=1, limit=4
    $region2: #{tpu_custom_call.1} parent=1 // loop_pre_header
      _
    $region3: #{tpu_custom_call.1} parent=1 // loop_header
      %s10 = sphi 0, %s14
      %p11 = scmp.ge.s32.totalorder %s10, 4
      %s17 = sphi 0, %s29
      %s18 = sphi 0, %s25
      %s19 = sphi 0, %s17
      %s20 = sphi 0, %s18
      %s21 = sphi 0, %s19
      %s22 = sphi 0, %s20
      %s34 = sphi 0, %s36
      %s37 = sphi 0, %s34
      %s38 = sphi 0, %s37
      %s54 = sphi 0, %s38
      %s62 = sphi 0, %s64
      %s65 = sphi 0, %s62
      %s66 = sphi 0, %s65
      %s82 = sphi 0, %s66
    $region4: #{tpu_custom_call.1} parent=1 // loop_header_branch
      %13 = sbr.rel (%p11) target = $region8
    $region5: #{tpu_custom_call.1} parent=1 // loop_body
      %s15 = ssub.s32 %s10, 1
      %s16 = ssub.s32 %s10, 2
      %s23 = sadd.s32 1, %s18
      %p24 = scmp.ge.s32.totalorder %s23, 1
      %s25 = scalar_select %p24, 0, %s23
      %s26 = sadd.s32 1, %s17
      %s27 = scalar_select %p24, %s26, %s17
      %p28 = scmp.ge.s32.totalorder %s27, 2
      %s29 = scalar_select %p28, 0, %s27
      %s30 = ssub.s32 %s17, %s29
      %s31 = ssub.s32 %s18, %s25
      %s32 = sor.u32 %s30, %s31
      %p33 = scmp.eq.s32.totalorder %s32, 0
      %s35 = sadd.s32 %s34, 1
      %s36 = scalar_select %p33, %s34, %s35
      %p39 = pneg %p33
      %p40 = scmp.eq.s32.totalorder %s10, 1
      %p41 = por %p39, %p40
      %p42 = scmp.ne.s32.totalorder %s34, %s37
      %p43 = scmp.eq.s32.totalorder %s10, 0
      %p44 = por %p42, %p43
      %p45 = scmp.ne.s32.totalorder %s34, %s37
      %p46 = scmp.eq.s32.totalorder %s15, 1
      %p47 = por %p45, %p46
      %p48 = scmp.ne.s32.totalorder %s37, %s38
      %p49 = scmp.eq.s32.totalorder %s15, 0
      %p50 = por %p48, %p49
      %p51 = scmp.ne.s32.totalorder %s37, %s38
      %p52 = scmp.eq.s32.totalorder %s16, 1
      %p53 = por %p51, %p52
      %p55 = scmp.ne.s32.totalorder %s38, %s54
      %p56 = scmp.eq.s32.totalorder %s16, 0
      %p57 = por %p55, %p56
      %s58 = ssub.s32 %s17, %s29
      %s59 = ssub.s32 %s18, %s25
      %s60 = sor.u32 %s58, %s59
      %p61 = scmp.eq.s32.totalorder %s60, 0
      %s63 = sadd.s32 %s62, 1
      %s64 = scalar_select %p61, %s62, %s63
      %p67 = pneg %p61
      %p68 = scmp.eq.s32.totalorder %s10, 1
      %p69 = por %p67, %p68
      %p70 = scmp.ne.s32.totalorder %s62, %s65
      %p71 = scmp.eq.s32.totalorder %s10, 0
      %p72 = por %p70, %p71
      %p73 = scmp.ne.s32.totalorder %s62, %s65
      %p74 = scmp.eq.s32.totalorder %s15, 1
      %p75 = por %p73, %p74
      %p76 = scmp.ne.s32.totalorder %s65, %s66
      %p77 = scmp.eq.s32.totalorder %s15, 0
      %p78 = por %p76, %p77
      %p79 = scmp.ne.s32.totalorder %s65, %s66
      %p80 = scmp.eq.s32.totalorder %s16, 1
      %p81 = por %p79, %p80
      %p83 = scmp.ne.s32.totalorder %s66, %s82
      %p84 = scmp.eq.s32.totalorder %s16, 0
      %p85 = por %p83, %p84
      %p86 = scmp.le.s32.totalorder 1, %s10
      %p87 = scmp.lt.s32.totalorder %s10, 3
      %p88 = pnand %p86, %p87
      %p89 = pneg %p88
      // Predicated region
      $region9: #{tpu_custom_call.1} parent=5 // pred_check
        _
      $region10: #{tpu_custom_call.1} parent=5 // pred_check_branch
        %91 = sbr.rel (%p88) target = $region12
      $region11: #{tpu_custom_call.1} parent=5 // pred_region
        %s92 = ssub.s32 %s10, 1
      $region12: #{tpu_custom_call.1} parent=5 // pred_fallthru
        _
      %p93 = scmp.lt.s32.totalorder %s10, 2
      // Predicated region
      $region13: #{tpu_custom_call.1} parent=5 // pred_check
        %p94 = pneg %p93
      $region14: #{tpu_custom_call.1} parent=5 // pred_check_branch
        %96 = sbr.rel (%p94) target = $region16
      $region15: #{tpu_custom_call.1} parent=5 // pred_region
        // Predicated region
        $region17: #{tpu_custom_call.1} parent=15 // pred_check
          %p97 = pneg %p44
        $region18: #{tpu_custom_call.1} parent=15 // pred_check_branch
          %99 = sbr.rel (%p97) target = $region20
        $region19: #{tpu_custom_call.1} parent=15 // pred_region
          %s100 = sand.u32 %s34, 1
          %s101 = scalar_lea.sflag [#allocation4], %s100
          %s102 = sand.u32 %s34, 1
          %s103 = smul.addr %s102, 64
          %s104 = scalar_lea.vmem [#allocation3], %s103
          %s105 = smul.u32 2, %s18
          %s107 = ssub.s32 1024, 1024
          %108 = vsyncadd %s101, %s107
          %s109 = smul.addr %s17, 8
          %s110 = sadd.s32 %s105, %s109
          %s111 = smul.addr %s110, 128
          %s112 = scalar_lea.hbm %s0, %s111
          %s113 = sshll.u32 %s104, 4
          %s114 = int_to_ptr.vmem [resolvable:$true] %s113
          %119 = dma.hbm_to_vmem [thread:$0]  %s112, 1024, %s114, %s101, 128, 128, 8
        $region20: #{tpu_custom_call.1} parent=15 // pred_fallthru
          _
      $region16: #{tpu_custom_call.1} parent=5 // pred_fallthru
        _
      %p120 = scmp.le.s32.totalorder 1, %s10
      %p121 = scmp.lt.s32.totalorder %s10, 3
      %p122 = pnand %p120, %p121
      %p123 = pneg %p122
      // Predicated region
      $region21: #{tpu_custom_call.1} parent=5 // pred_check
        _
      $region22: #{tpu_custom_call.1} parent=5 // pred_check_branch
        %125 = sbr.rel (%p122) target = $region24
      $region23: #{tpu_custom_call.1} parent=5 // pred_region
        %s126 = ssub.s32 %s10, 1
        %s127 = sand.u32 %s37, 1
        %s128 = scalar_lea.sflag [#allocation4], %s127
        %s129 = sand.u32 %s37, 1
        %s130 = smul.addr %s129, 64
        %s131 = scalar_lea.vmem [#allocation3], %s130
        // Predicated region
        $region25: #{tpu_custom_call.1} parent=23 // pred_check
          %p132 = pneg %p50
        $region26: #{tpu_custom_call.1} parent=23 // pred_check_branch
          %134 = sbr.rel (%p132) target = $region28
        $region27: #{tpu_custom_call.1} parent=23 // pred_region
          %135 = dma.done %s128, 1024
        $region28: #{tpu_custom_call.1} parent=23 // pred_fallthru
          _
        %s136 = sand.u32 %s37, 1
        %s137 = scalar_lea.sflag [#allocation4], %s136
        %s138 = sand.u32 %s37, 1
        %s139 = smul.addr %s138, 64
        %s140 = scalar_lea.vmem [#allocation3], %s139
        %p141 = pneg %p50
        %p142 = pneg %p47
        %p143 = pneg %p78
        %p144 = pneg %p75
        %p145 = scmp.lt.s32.totalorder %s19, 1
        %s146 = scalar_select %p145, %s19, 1
        %p147 = scmp.lt.s32.totalorder %s20, 0
        %s148 = scalar_select %p147, %s20, 0
        %s149 = smul.addr %s146, 16
        %s150 = sadd.s32 %s148, %s149
        %s151 = smul.addr %s150, 8
        %s152 = scalar_lea.vmem %s1, %s151
        %s153 = smul.u32 2, %s20
        %p154 = scmp.lt.s32.totalorder %s19, 1
        %s155 = scalar_select %p154, %s19, 1
        %p156 = scmp.lt.s32.totalorder %s20, 0
        %s157 = scalar_select %p156, %s20, 0
        %s158 = smul.addr %s155, 16
        %s159 = sadd.s32 %s157, %s158
        %s160 = smul.addr %s159, 8
        %s161 = scalar_lea.vmem %s1, %s160
        %v162 = vld [vmem:[%s131] ss:$2 sm:$0xff]
        %s163 = scalar_lea.vmem %s131, 16 [#allocation3]
        %v164 = vld [vmem:[%s163] ss:$2 sm:$0xff]
        %s165 = scalar_lea.vmem %s131, 32 [#allocation3]
        %v166 = vld [vmem:[%s165] ss:$2 sm:$0xff]
        %s167 = scalar_lea.vmem %s131, 48 [#allocation3]
        %v168 = vld [vmem:[%s167] ss:$2 sm:$0xff]
        %169 = vxpose.xlu0.b32.start [1/16] %v162, 128
        %170 = vxpose.xlu0.b32.cont [2/16] 0.0, 128
        %171 = vxpose.xlu0.b32.cont [3/16] 0.0, 128
        %172 = vxpose.xlu0.b32.cont [4/16] 0.0, 128
        %173 = vxpose.xlu0.b32.cont [5/16] 0.0, 128
        %174 = vxpose.xlu0.b32.cont [6/16] 0.0, 128
        %175 = vxpose.xlu0.b32.cont [7/16] 0.0, 128
        %176 = vxpose.xlu0.b32.cont [8/16] 0.0, 128
        %177 = vxpose.xlu0.b32.cont [9/16] 0.0, 128
        %178 = vxpose.xlu0.b32.cont [10/16] 0.0, 128
        %179 = vxpose.xlu0.b32.cont [11/16] 0.0, 128
        %180 = vxpose.xlu0.b32.cont [12/16] 0.0, 128
        %181 = vxpose.xlu0.b32.cont [13/16] 0.0, 128
        %182 = vxpose.xlu0.b32.cont [14/16] 0.0, 128
        %183 = vxpose.xlu0.b32.cont [15/16] 0.0, 128
        %184 = vxpose.xlu0.b32.end [16/16] 0.0, 128
        %v185 = vpop.trf.xlu0
        %v186 = vpop.trf.xlu0
        %v187 = vpop.trf.xlu0
        %v188 = vpop.trf.xlu0
        %v189 = vpop.trf.xlu0
        %v190 = vpop.trf.xlu0
        %v191 = vpop.trf.xlu0
        %v192 = vpop.trf.xlu0
        %v193 = vpop.trf.xlu0
        %v194 = vpop.trf.xlu0
        %v195 = vpop.trf.xlu0
        %v196 = vpop.trf.xlu0
        %v197 = vpop.trf.xlu0
        %v198 = vpop.trf.xlu0
        %v199 = vpop.trf.xlu0
        %v200 = vpop.trf.xlu0
        %201 = vxpose.xlu0.b32.start [1/16] %v164, 128
        %202 = vxpose.xlu0.b32.cont [2/16] 0.0, 128
        %203 = vxpose.xlu0.b32.cont [3/16] 0.0, 128
        %204 = vxpose.xlu0.b32.cont [4/16] 0.0, 128
        %205 = vxpose.xlu0.b32.cont [5/16] 0.0, 128
        %206 = vxpose.xlu0.b32.cont [6/16] 0.0, 128
        %207 = vxpose.xlu0.b32.cont [7/16] 0.0, 128
        %208 = vxpose.xlu0.b32.cont [8/16] 0.0, 128
        %209 = vxpose.xlu0.b32.cont [9/16] 0.0, 128
        %210 = vxpose.xlu0.b32.cont [10/16] 0.0, 128
        %211 = vxpose.xlu0.b32.cont [11/16] 0.0, 128
        %212 = vxpose.xlu0.b32.cont [12/16] 0.0, 128
        %213 = vxpose.xlu0.b32.cont [13/16] 0.0, 128
        %214 = vxpose.xlu0.b32.cont [14/16] 0.0, 128
        %215 = vxpose.xlu0.b32.cont [15/16] 0.0, 128
        %216 = vxpose.xlu0.b32.end [16/16] 0.0, 128
        %v217 = vpop.trf.xlu0
        %v218 = vpop.trf.xlu0
        %v219 = vpop.trf.xlu0
        %v220 = vpop.trf.xlu0
        %v221 = vpop.trf.xlu0
        %v222 = vpop.trf.xlu0
        %v223 = vpop.trf.xlu0
        %v224 = vpop.trf.xlu0
        %v225 = vpop.trf.xlu0
        %v226 = vpop.trf.xlu0
        %v227 = vpop.trf.xlu0
        %v228 = vpop.trf.xlu0
        %v229 = vpop.trf.xlu0
        %v230 = vpop.trf.xlu0
        %v231 = vpop.trf.xlu0
        %v232 = vpop.trf.xlu0
        %233 = vxpose.xlu0.b32.start [1/16] %v166, 128
        %234 = vxpose.xlu0.b32.cont [2/16] 0.0, 128
        %235 = vxpose.xlu0.b32.cont [3/16] 0.0, 128
        %236 = vxpose.xlu0.b32.cont [4/16] 0.0, 128
        %237 = vxpose.xlu0.b32.cont [5/16] 0.0, 128
        %238 = vxpose.xlu0.b32.cont [6/16] 0.0, 128
        %239 = vxpose.xlu0.b32.cont [7/16] 0.0, 128
        %240 = vxpose.xlu0.b32.cont [8/16] 0.0, 128
        %241 = vxpose.xlu0.b32.cont [9/16] 0.0, 128
        %242 = vxpose.xlu0.b32.cont [10/16] 0.0, 128
        %243 = vxpose.xlu0.b32.cont [11/16] 0.0, 128
        %244 = vxpose.xlu0.b32.cont [12/16] 0.0, 128
        %245 = vxpose.xlu0.b32.cont [13/16] 0.0, 128
        %246 = vxpose.xlu0.b32.cont [14/16] 0.0, 128
        %247 = vxpose.xlu0.b32.cont [15/16] 0.0, 128
        %248 = vxpose.xlu0.b32.end [16/16] 0.0, 128
        %v249 = vpop.trf.xlu0
        %v250 = vpop.trf.xlu0
        %v251 = vpop.trf.xlu0
        %v252 = vpop.trf.xlu0
        %v253 = vpop.trf.xlu0
        %v254 = vpop.trf.xlu0
        %v255 = vpop.trf.xlu0
        %v256 = vpop.trf.xlu0
        %v257 = vpop.trf.xlu0
        %v258 = vpop.trf.xlu0
        %v259 = vpop.trf.xlu0
        %v260 = vpop.trf.xlu0
        %v261 = vpop.trf.xlu0
        %v262 = vpop.trf.xlu0
        %v263 = vpop.trf.xlu0
        %v264 = vpop.trf.xlu0
        %265 = vxpose.xlu0.b32.start [1/16] %v168, 128
        %266 = vxpose.xlu0.b32.cont [2/16] 0.0, 128
        %267 = vxpose.xlu0.b32.cont [3/16] 0.0, 128
        %268 = vxpose.xlu0.b32.cont [4/16] 0.0, 128
        %269 = vxpose.xlu0.b32.cont [5/16] 0.0, 128
        %270 = vxpose.xlu0.b32.cont [6/16] 0.0, 128
        %271 = vxpose.xlu0.b32.cont [7/16] 0.0, 128
        %272 = vxpose.xlu0.b32.cont [8/16] 0.0, 128
        %273 = vxpose.xlu0.b32.cont [9/16] 0.0, 128
        %274 = vxpose.xlu0.b32.cont [10/16] 0.0, 128
        %275 = vxpose.xlu0.b32.cont [11/16] 0.0, 128
        %276 = vxpose.xlu0.b32.cont [12/16] 0.0, 128
        %277 = vxpose.xlu0.b32.cont [13/16] 0.0, 128
        %278 = vxpose.xlu0.b32.cont [14/16] 0.0, 128
        %279 = vxpose.xlu0.b32.cont [15/16] 0.0, 128
        %280 = vxpose.xlu0.b32.end [16/16] 0.0, 128
        %v281 = vpop.trf.xlu0
        %v282 = vpop.trf.xlu0
        %v283 = vpop.trf.xlu0
        %v284 = vpop.trf.xlu0
        %v285 = vpop.trf.xlu0
        %v286 = vpop.trf.xlu0
        %v287 = vpop.trf.xlu0
        %v288 = vpop.trf.xlu0
        %v289 = vpop.trf.xlu0
        %v290 = vpop.trf.xlu0
        %v291 = vpop.trf.xlu0
        %v292 = vpop.trf.xlu0
        %v293 = vpop.trf.xlu0
        %v294 = vpop.trf.xlu0
        %v295 = vpop.trf.xlu0
        %v296 = vpop.trf.xlu0
        %vm297 = vcmask 64512
        %298 = vst.msk [vmem:[#allocation2] sm:$0xff] %vm297, %v185
        %299 = vst.msk [vmem:[#allocation2 + $0x8] sm:$0xff] %vm297, %v186
        %300 = vst.msk [vmem:[#allocation2 + $0x10] sm:$0xff] %vm297, %v217
        %301 = vst.msk [vmem:[#allocation2 + $0x18] sm:$0xff] %vm297, %v218
        %302 = vst.msk [vmem:[#allocation2 + $0x20] sm:$0xff] %vm297, %v249
        %303 = vst.msk [vmem:[#allocation2 + $0x28] sm:$0xff] %vm297, %v250
        %304 = vst.msk [vmem:[#allocation2 + $0x30] sm:$0xff] %vm297, %v281
        %305 = vst.msk [vmem:[#allocation2 + $0x38] sm:$0xff] %vm297, %v282
        %v306 = vld [vmem:[#allocation2] ss:$2 sm:$0xff]
        %s307 = scalar_lea.vmem [#allocation2], 16
        %v308 = vld [vmem:[%s307] ss:$2 sm:$0xff]
        %s309 = scalar_lea.vmem [#allocation2], 32
        %v310 = vld [vmem:[%s309] ss:$2 sm:$0xff]
        %s311 = scalar_lea.vmem [#allocation2], 48
        %v312 = vld [vmem:[%s311] ss:$2 sm:$0xff]
        %313 = vxpose.xlu0.b32.start [1/16] %v306, 128
        %314 = vxpose.xlu0.b32.cont [2/16] 0.0, 128
        %315 = vxpose.xlu0.b32.cont [3/16] 0.0, 128
        %316 = vxpose.xlu0.b32.cont [4/16] 0.0, 128
        %317 = vxpose.xlu0.b32.cont [5/16] 0.0, 128
        %318 = vxpose.xlu0.b32.cont [6/16] 0.0, 128
        %319 = vxpose.xlu0.b32.cont [7/16] 0.0, 128
        %320 = vxpose.xlu0.b32.cont [8/16] 0.0, 128
        %321 = vxpose.xlu0.b32.cont [9/16] 0.0, 128
        %322 = vxpose.xlu0.b32.cont [10/16] 0.0, 128
        %323 = vxpose.xlu0.b32.cont [11/16] 0.0, 128
        %324 = vxpose.xlu0.b32.cont [12/16] 0.0, 128
        %325 = vxpose.xlu0.b32.cont [13/16] 0.0, 128
        %326 = vxpose.xlu0.b32.cont [14/16] 0.0, 128
        %327 = vxpose.xlu0.b32.cont [15/16] 0.0, 128
        %328 = vxpose.xlu0.b32.end [16/16] 0.0, 128
        %v329 = vpop.trf.xlu0
        %v330 = vpop.trf.xlu0
        %v331 = vpop.trf.xlu0
        %v332 = vpop.trf.xlu0
        %v333 = vpop.trf.xlu0
        %v334 = vpop.trf.xlu0
        %v335 = vpop.trf.xlu0
        %v336 = vpop.trf.xlu0
        %v337 = vpop.trf.xlu0
        %v338 = vpop.trf.xlu0
        %v339 = vpop.trf.xlu0
        %v340 = vpop.trf.xlu0
        %v341 = vpop.trf.xlu0
        %v342 = vpop.trf.xlu0
        %v343 = vpop.trf.xlu0
        %v344 = vpop.trf.xlu0
        %345 = vxpose.xlu0.b32.start [1/16] %v308, 128
        %346 = vxpose.xlu0.b32.cont [2/16] 0.0, 128
        %347 = vxpose.xlu0.b32.cont [3/16] 0.0, 128
        %348 = vxpose.xlu0.b32.cont [4/16] 0.0, 128
        %349 = vxpose.xlu0.b32.cont [5/16] 0.0, 128
        %350 = vxpose.xlu0.b32.cont [6/16] 0.0, 128
        %351 = vxpose.xlu0.b32.cont [7/16] 0.0, 128
        %352 = vxpose.xlu0.b32.cont [8/16] 0.0, 128
        %353 = vxpose.xlu0.b32.cont [9/16] 0.0, 128
        %354 = vxpose.xlu0.b32.cont [10/16] 0.0, 128
        %355 = vxpose.xlu0.b32.cont [11/16] 0.0, 128
        %356 = vxpose.xlu0.b32.cont [12/16] 0.0, 128
        %357 = vxpose.xlu0.b32.cont [13/16] 0.0, 128
        %358 = vxpose.xlu0.b32.cont [14/16] 0.0, 128
        %359 = vxpose.xlu0.b32.cont [15/16] 0.0, 128
        %360 = vxpose.xlu0.b32.end [16/16] 0.0, 128
        %v361 = vpop.trf.xlu0
        %v362 = vpop.trf.xlu0
        %v363 = vpop.trf.xlu0
        %v364 = vpop.trf.xlu0
        %v365 = vpop.trf.xlu0
        %v366 = vpop.trf.xlu0
        %v367 = vpop.trf.xlu0
        %v368 = vpop.trf.xlu0
        %v369 = vpop.trf.xlu0
        %v370 = vpop.trf.xlu0
        %v371 = vpop.trf.xlu0
        %v372 = vpop.trf.xlu0
        %v373 = vpop.trf.xlu0
        %v374 = vpop.trf.xlu0
        %v375 = vpop.trf.xlu0
        %v376 = vpop.trf.xlu0
        %377 = vxpose.xlu0.b32.start [1/16] %v310, 128
        %378 = vxpose.xlu0.b32.cont [2/16] 0.0, 128
        %379 = vxpose.xlu0.b32.cont [3/16] 0.0, 128
        %380 = vxpose.xlu0.b32.cont [4/16] 0.0, 128
        %381 = vxpose.xlu0.b32.cont [5/16] 0.0, 128
        %382 = vxpose.xlu0.b32.cont [6/16] 0.0, 128
        %383 = vxpose.xlu0.b32.cont [7/16] 0.0, 128
        %384 = vxpose.xlu0.b32.cont [8/16] 0.0, 128
        %385 = vxpose.xlu0.b32.cont [9/16] 0.0, 128
        %386 = vxpose.xlu0.b32.cont [10/16] 0.0, 128
        %387 = vxpose.xlu0.b32.cont [11/16] 0.0, 128
        %388 = vxpose.xlu0.b32.cont [12/16] 0.0, 128
        %389 = vxpose.xlu0.b32.cont [13/16] 0.0, 128
        %390 = vxpose.xlu0.b32.cont [14/16] 0.0, 128
        %391 = vxpose.xlu0.b32.cont [15/16] 0.0, 128
        %392 = vxpose.xlu0.b32.end [16/16] 0.0, 128
        %v393 = vpop.trf.xlu0
        %v394 = vpop.trf.xlu0
        %v395 = vpop.trf.xlu0
        %v396 = vpop.trf.xlu0
        %v397 = vpop.trf.xlu0
        %v398 = vpop.trf.xlu0
        %v399 = vpop.trf.xlu0
        %v400 = vpop.trf.xlu0
        %v401 = vpop.trf.xlu0
        %v402 = vpop.trf.xlu0
        %v403 = vpop.trf.xlu0
        %v404 = vpop.trf.xlu0
        %v405 = vpop.trf.xlu0
        %v406 = vpop.trf.xlu0
        %v407 = vpop.trf.xlu0
        %v408 = vpop.trf.xlu0
        %409 = vxpose.xlu0.b32.start [1/16] %v312, 128
        %410 = vxpose.xlu0.b32.cont [2/16] 0.0, 128
        %411 = vxpose.xlu0.b32.cont [3/16] 0.0, 128
        %412 = vxpose.xlu0.b32.cont [4/16] 0.0, 128
        %413 = vxpose.xlu0.b32.cont [5/16] 0.0, 128
        %414 = vxpose.xlu0.b32.cont [6/16] 0.0, 128
        %415 = vxpose.xlu0.b32.cont [7/16] 0.0, 128
        %416 = vxpose.xlu0.b32.cont [8/16] 0.0, 128
        %417 = vxpose.xlu0.b32.cont [9/16] 0.0, 128
        %418 = vxpose.xlu0.b32.cont [10/16] 0.0, 128
        %419 = vxpose.xlu0.b32.cont [11/16] 0.0, 128
        %420 = vxpose.xlu0.b32.cont [12/16] 0.0, 128
        %421 = vxpose.xlu0.b32.cont [13/16] 0.0, 128
        %422 = vxpose.xlu0.b32.cont [14/16] 0.0, 128
        %423 = vxpose.xlu0.b32.cont [15/16] 0.0, 128
        %424 = vxpose.xlu0.b32.end [16/16] 0.0, 128
        %v425 = vpop.trf.xlu0
        %v426 = vpop.trf.xlu0
        %v427 = vpop.trf.xlu0
        %v428 = vpop.trf.xlu0
        %v429 = vpop.trf.xlu0
        %v430 = vpop.trf.xlu0
        %v431 = vpop.trf.xlu0
        %v432 = vpop.trf.xlu0
        %v433 = vpop.trf.xlu0
        %v434 = vpop.trf.xlu0
        %v435 = vpop.trf.xlu0
        %v436 = vpop.trf.xlu0
        %v437 = vpop.trf.xlu0
        %v438 = vpop.trf.xlu0
        %v439 = vpop.trf.xlu0
        %v440 = vpop.trf.xlu0
        %441 = vst.msk [vmem:[%s161] sm:$0xff] %vm297, %v329
        %442 = vst.msk [vmem:[%s161 + $0x8] sm:$0xff] %vm297, %v361
        %443 = vst.msk [vmem:[%s161 + $0x10] sm:$0xff] %vm297, %v393
        %444 = vst.msk [vmem:[%s161 + $0x18] sm:$0xff] %vm297, %v425
        %s445 = scalar_lea.vmem [#allocation2], 1
        %v446 = vld [vmem:[%s445] ss:$2 sm:$0xff]
        %s447 = scalar_lea.vmem [#allocation2], 17
        %v448 = vld [vmem:[%s447] ss:$2 sm:$0xff]
        %s449 = scalar_lea.vmem [#allocation2], 33
        %v450 = vld [vmem:[%s449] ss:$2 sm:$0xff]
        %s451 = scalar_lea.vmem [#allocation2], 49
        %v452 = vld [vmem:[%s451] ss:$2 sm:$0xff]
        %453 = vxpose.xlu0.b32.start [1/16] %v446, 128
        %454 = vxpose.xlu0.b32.cont [2/16] 0.0, 128
        %455 = vxpose.xlu0.b32.cont [3/16] 0.0, 128
        %456 = vxpose.xlu0.b32.cont [4/16] 0.0, 128
        %457 = vxpose.xlu0.b32.cont [5/16] 0.0, 128
        %458 = vxpose.xlu0.b32.cont [6/16] 0.0, 128
        %459 = vxpose.xlu0.b32.cont [7/16] 0.0, 128
        %460 = vxpose.xlu0.b32.cont [8/16] 0.0, 128
        %461 = vxpose.xlu0.b32.cont [9/16] 0.0, 128
        %462 = vxpose.xlu0.b32.cont [10/16] 0.0, 128
        %463 = vxpose.xlu0.b32.cont [11/16] 0.0, 128
        %464 = vxpose.xlu0.b32.cont [12/16] 0.0, 128
        %465 = vxpose.xlu0.b32.cont [13/16] 0.0, 128
        %466 = vxpose.xlu0.b32.cont [14/16] 0.0, 128
        %467 = vxpose.xlu0.b32.cont [15/16] 0.0, 128
        %468 = vxpose.xlu0.b32.end [16/16] 0.0, 128
        %v469 = vpop.trf.xlu0
        %v470 = vpop.trf.xlu0
        %v471 = vpop.trf.xlu0
        %v472 = vpop.trf.xlu0
        %v473 = vpop.trf.xlu0
        %v474 = vpop.trf.xlu0
        %v475 = vpop.trf.xlu0
        %v476 = vpop.trf.xlu0
        %v477 = vpop.trf.xlu0
        %v478 = vpop.trf.xlu0
        %v479 = vpop.trf.xlu0
        %v480 = vpop.trf.xlu0
        %v481 = vpop.trf.xlu0
        %v482 = vpop.trf.xlu0
        %v483 = vpop.trf.xlu0
        %v484 = vpop.trf.xlu0
        %485 = vxpose.xlu0.b32.start [1/16] %v448, 128
        %486 = vxpose.xlu0.b32.cont [2/16] 0.0, 128
        %487 = vxpose.xlu0.b32.cont [3/16] 0.0, 128
        %488 = vxpose.xlu0.b32.cont [4/16] 0.0, 128
        %489 = vxpose.xlu0.b32.cont [5/16] 0.0, 128
        %490 = vxpose.xlu0.b32.cont [6/16] 0.0, 128
        %491 = vxpose.xlu0.b32.cont [7/16] 0.0, 128
        %492 = vxpose.xlu0.b32.cont [8/16] 0.0, 128
        %493 = vxpose.xlu0.b32.cont [9/16] 0.0, 128
        %494 = vxpose.xlu0.b32.cont [10/16] 0.0, 128
        %495 = vxpose.xlu0.b32.cont [11/16] 0.0, 128
        %496 = vxpose.xlu0.b32.cont [12/16] 0.0, 128
        %497 = vxpose.xlu0.b32.cont [13/16] 0.0, 128
        %498 = vxpose.xlu0.b32.cont [14/16] 0.0, 128
        %499 = vxpose.xlu0.b32.cont [15/16] 0.0, 128
        %500 = vxpose.xlu0.b32.end [16/16] 0.0, 128
        %v501 = vpop.trf.xlu0
        %v502 = vpop.trf.xlu0
        %v503 = vpop.trf.xlu0
        %v504 = vpop.trf.xlu0
        %v505 = vpop.trf.xlu0
        %v506 = vpop.trf.xlu0
        %v507 = vpop.trf.xlu0
        %v508 = vpop.trf.xlu0
        %v509 = vpop.trf.xlu0
        %v510 = vpop.trf.xlu0
        %v511 = vpop.trf.xlu0
        %v512 = vpop.trf.xlu0
        %v513 = vpop.trf.xlu0
        %v514 = vpop.trf.xlu0
        %v515 = vpop.trf.xlu0
        %v516 = vpop.trf.xlu0
        %517 = vxpose.xlu0.b32.start [1/16] %v450, 128
        %518 = vxpose.xlu0.b32.cont [2/16] 0.0, 128
        %519 = vxpose.xlu0.b32.cont [3/16] 0.0, 128
        %520 = vxpose.xlu0.b32.cont [4/16] 0.0, 128
        %521 = vxpose.xlu0.b32.cont [5/16] 0.0, 128
        %522 = vxpose.xlu0.b32.cont [6/16] 0.0, 128
        %523 = vxpose.xlu0.b32.cont [7/16] 0.0, 128
        %524 = vxpose.xlu0.b32.cont [8/16] 0.0, 128
        %525 = vxpose.xlu0.b32.cont [9/16] 0.0, 128
        %526 = vxpose.xlu0.b32.cont [10/16] 0.0, 128
        %527 = vxpose.xlu0.b32.cont [11/16] 0.0, 128
        %528 = vxpose.xlu0.b32.cont [12/16] 0.0, 128
        %529 = vxpose.xlu0.b32.cont [13/16] 0.0, 128
        %530 = vxpose.xlu0.b32.cont [14/16] 0.0, 128
        %531 = vxpose.xlu0.b32.cont [15/16] 0.0, 128
        %532 = vxpose.xlu0.b32.end [16/16] 0.0, 128
        %v533 = vpop.trf.xlu0
        %v534 = vpop.trf.xlu0
        %v535 = vpop.trf.xlu0
        %v536 = vpop.trf.xlu0
        %v537 = vpop.trf.xlu0
        %v538 = vpop.trf.xlu0
        %v539 = vpop.trf.xlu0
        %v540 = vpop.trf.xlu0
        %v541 = vpop.trf.xlu0
        %v542 = vpop.trf.xlu0
        %v543 = vpop.trf.xlu0
        %v544 = vpop.trf.xlu0
        %v545 = vpop.trf.xlu0
        %v546 = vpop.trf.xlu0
        %v547 = vpop.trf.xlu0
        %v548 = vpop.trf.xlu0
        %549 = vxpose.xlu0.b32.start [1/16] %v452, 128
        %550 = vxpose.xlu0.b32.cont [2/16] 0.0, 128
        %551 = vxpose.xlu0.b32.cont [3/16] 0.0, 128
        %552 = vxpose.xlu0.b32.cont [4/16] 0.0, 128
        %553 = vxpose.xlu0.b32.cont [5/16] 0.0, 128
        %554 = vxpose.xlu0.b32.cont [6/16] 0.0, 128
        %555 = vxpose.xlu0.b32.cont [7/16] 0.0, 128
        %556 = vxpose.xlu0.b32.cont [8/16] 0.0, 128
        %557 = vxpose.xlu0.b32.cont [9/16] 0.0, 128
        %558 = vxpose.xlu0.b32.cont [10/16] 0.0, 128
        %559 = vxpose.xlu0.b32.cont [11/16] 0.0, 128
        %560 = vxpose.xlu0.b32.cont [12/16] 0.0, 128
        %561 = vxpose.xlu0.b32.cont [13/16] 0.0, 128
        %562 = vxpose.xlu0.b32.cont [14/16] 0.0, 128
        %563 = vxpose.xlu0.b32.cont [15/16] 0.0, 128
        %564 = vxpose.xlu0.b32.end [16/16] 0.0, 128
        %v565 = vpop.trf.xlu0
        %v566 = vpop.trf.xlu0
        %v567 = vpop.trf.xlu0
        %v568 = vpop.trf.xlu0
        %v569 = vpop.trf.xlu0
        %v570 = vpop.trf.xlu0
        %v571 = vpop.trf.xlu0
        %v572 = vpop.trf.xlu0
        %v573 = vpop.trf.xlu0
        %v574 = vpop.trf.xlu0
        %v575 = vpop.trf.xlu0
        %v576 = vpop.trf.xlu0
        %v577 = vpop.trf.xlu0
        %v578 = vpop.trf.xlu0
        %v579 = vpop.trf.xlu0
        %v580 = vpop.trf.xlu0
        %s581 = scalar_lea.vmem %s161, 32
        %582 = vst.msk [vmem:[%s581] sm:$0xff] %vm297, %v469
        %583 = vst.msk [vmem:[%s581 + $0x8] sm:$0xff] %vm297, %v501
        %584 = vst.msk [vmem:[%s581 + $0x10] sm:$0xff] %vm297, %v533
        %585 = vst.msk [vmem:[%s581 + $0x18] sm:$0xff] %vm297, %v565
        %s586 = scalar_lea.vmem %s131, 1 [#allocation3]
        %v587 = vld [vmem:[%s586] ss:$2 sm:$0xff]
        %s588 = scalar_lea.vmem %s131, 17 [#allocation3]
        %v589 = vld [vmem:[%s588] ss:$2 sm:$0xff]
        %s590 = scalar_lea.vmem %s131, 33 [#allocation3]
        %v591 = vld [vmem:[%s590] ss:$2 sm:$0xff]
        %s592 = scalar_lea.vmem %s131, 49 [#allocation3]
        %v593 = vld [vmem:[%s592] ss:$2 sm:$0xff]
        %594 = vxpose.xlu0.b32.start [1/16] %v587, 128
        %595 = vxpose.xlu0.b32.cont [2/16] 0.0, 128
        %596 = vxpose.xlu0.b32.cont [3/16] 0.0, 128
        %597 = vxpose.xlu0.b32.cont [4/16] 0.0, 128
        %598 = vxpose.xlu0.b32.cont [5/16] 0.0, 128
        %599 = vxpose.xlu0.b32.cont [6/16] 0.0, 128
        %600 = vxpose.xlu0.b32.cont [7/16] 0.0, 128
        %601 = vxpose.xlu0.b32.cont [8/16] 0.0, 128
        %602 = vxpose.xlu0.b32.cont [9/16] 0.0, 128
        %603 = vxpose.xlu0.b32.cont [10/16] 0.0, 128
        %604 = vxpose.xlu0.b32.cont [11/16] 0.0, 128
        %605 = vxpose.xlu0.b32.cont [12/16] 0.0, 128
        %606 = vxpose.xlu0.b32.cont [13/16] 0.0, 128
        %607 = vxpose.xlu0.b32.cont [14/16] 0.0, 128
        %608 = vxpose.xlu0.b32.cont [15/16] 0.0, 128
        %609 = vxpose.xlu0.b32.end [16/16] 0.0, 128
        %v610 = vpop.trf.xlu0
        %v611 = vpop.trf.xlu0
        %v612 = vpop.trf.xlu0
        %v613 = vpop.trf.xlu0
        %v614 = vpop.trf.xlu0
        %v615 = vpop.trf.xlu0
        %v616 = vpop.trf.xlu0
        %v617 = vpop.trf.xlu0
        %v618 = vpop.trf.xlu0
        %v619 = vpop.trf.xlu0
        %v620 = vpop.trf.xlu0
        %v621 = vpop.trf.xlu0
        %v622 = vpop.trf.xlu0
        %v623 = vpop.trf.xlu0
        %v624 = vpop.trf.xlu0
        %v625 = vpop.trf.xlu0
        %626 = vxpose.xlu0.b32.start [1/16] %v589, 128
        %627 = vxpose.xlu0.b32.cont [2/16] 0.0, 128
        %628 = vxpose.xlu0.b32.cont [3/16] 0.0, 128
        %629 = vxpose.xlu0.b32.cont [4/16] 0.0, 128
        %630 = vxpose.xlu0.b32.cont [5/16] 0.0, 128
        %631 = vxpose.xlu0.b32.cont [6/16] 0.0, 128
        %632 = vxpose.xlu0.b32.cont [7/16] 0.0, 128
        %633 = vxpose.xlu0.b32.cont [8/16] 0.0, 128
        %634 = vxpose.xlu0.b32.cont [9/16] 0.0, 128
        %635 = vxpose.xlu0.b32.cont [10/16] 0.0, 128
        %636 = vxpose.xlu0.b32.cont [11/16] 0.0, 128
        %637 = vxpose.xlu0.b32.cont [12/16] 0.0, 128
        %638 = vxpose.xlu0.b32.cont [13/16] 0.0, 128
        %639 = vxpose.xlu0.b32.cont [14/16] 0.0, 128
        %640 = vxpose.xlu0.b32.cont [15/16] 0.0, 128
        %641 = vxpose.xlu0.b32.end [16/16] 0.0, 128
        %v642 = vpop.trf.xlu0
        %v643 = vpop.trf.xlu0
        %v644 = vpop.trf.xlu0
        %v645 = vpop.trf.xlu0
        %v646 = vpop.trf.xlu0
        %v647 = vpop.trf.xlu0
        %v648 = vpop.trf.xlu0
        %v649 = vpop.trf.xlu0
        %v650 = vpop.trf.xlu0
        %v651 = vpop.trf.xlu0
        %v652 = vpop.trf.xlu0
        %v653 = vpop.trf.xlu0
        %v654 = vpop.trf.xlu0
        %v655 = vpop.trf.xlu0
        %v656 = vpop.trf.xlu0
        %v657 = vpop.trf.xlu0
        %658 = vxpose.xlu0.b32.start [1/16] %v591, 128
        %659 = vxpose.xlu0.b32.cont [2/16] 0.0, 128
        %660 = vxpose.xlu0.b32.cont [3/16] 0.0, 128
        %661 = vxpose.xlu0.b32.cont [4/16] 0.0, 128
        %662 = vxpose.xlu0.b32.cont [5/16] 0.0, 128
        %663 = vxpose.xlu0.b32.cont [6/16] 0.0, 128
        %664 = vxpose.xlu0.b32.cont [7/16] 0.0, 128
        %665 = vxpose.xlu0.b32.cont [8/16] 0.0, 128
        %666 = vxpose.xlu0.b32.cont [9/16] 0.0, 128
        %667 = vxpose.xlu0.b32.cont [10/16] 0.0, 128
        %668 = vxpose.xlu0.b32.cont [11/16] 0.0, 128
        %669 = vxpose.xlu0.b32.cont [12/16] 0.0, 128
        %670 = vxpose.xlu0.b32.cont [13/16] 0.0, 128
        %671 = vxpose.xlu0.b32.cont [14/16] 0.0, 128
        %672 = vxpose.xlu0.b32.cont [15/16] 0.0, 128
        %673 = vxpose.xlu0.b32.end [16/16] 0.0, 128
        %v674 = vpop.trf.xlu0
        %v675 = vpop.trf.xlu0
        %v676 = vpop.trf.xlu0
        %v677 = vpop.trf.xlu0
        %v678 = vpop.trf.xlu0
        %v679 = vpop.trf.xlu0
        %v680 = vpop.trf.xlu0
        %v681 = vpop.trf.xlu0
        %v682 = vpop.trf.xlu0
        %v683 = vpop.trf.xlu0
        %v684 = vpop.trf.xlu0
        %v685 = vpop.trf.xlu0
        %v686 = vpop.trf.xlu0
        %v687 = vpop.trf.xlu0
        %v688 = vpop.trf.xlu0
        %v689 = vpop.trf.xlu0
        %690 = vxpose.xlu0.b32.start [1/16] %v593, 128
        %691 = vxpose.xlu0.b32.cont [2/16] 0.0, 128
        %692 = vxpose.xlu0.b32.cont [3/16] 0.0, 128
        %693 = vxpose.xlu0.b32.cont [4/16] 0.0, 128
        %694 = vxpose.xlu0.b32.cont [5/16] 0.0, 128
        %695 = vxpose.xlu0.b32.cont [6/16] 0.0, 128
        %696 = vxpose.xlu0.b32.cont [7/16] 0.0, 128
        %697 = vxpose.xlu0.b32.cont [8/16] 0.0, 128
        %698 = vxpose.xlu0.b32.cont [9/16] 0.0, 128
        %699 = vxpose.xlu0.b32.cont [10/16] 0.0, 128
        %700 = vxpose.xlu0.b32.cont [11/16] 0.0, 128
        %701 = vxpose.xlu0.b32.cont [12/16] 0.0, 128
        %702 = vxpose.xlu0.b32.cont [13/16] 0.0, 128
        %703 = vxpose.xlu0.b32.cont [14/16] 0.0, 128
        %704 = vxpose.xlu0.b32.cont [15/16] 0.0, 128
        %705 = vxpose.xlu0.b32.end [16/16] 0.0, 128
        %v706 = vpop.trf.xlu0
        %v707 = vpop.trf.xlu0
        %v708 = vpop.trf.xlu0
        %v709 = vpop.trf.xlu0
        %v710 = vpop.trf.xlu0
        %v711 = vpop.trf.xlu0
        %v712 = vpop.trf.xlu0
        %v713 = vpop.trf.xlu0
        %v714 = vpop.trf.xlu0
        %v715 = vpop.trf.xlu0
        %v716 = vpop.trf.xlu0
        %v717 = vpop.trf.xlu0
        %v718 = vpop.trf.xlu0
        %v719 = vpop.trf.xlu0
        %v720 = vpop.trf.xlu0
        %v721 = vpop.trf.xlu0
        %722 = vst.msk [vmem:[#allocation2] sm:$0xff] %vm297, %v610
        %723 = vst.msk [vmem:[#allocation2 + $0x8] sm:$0xff] %vm297, %v611
        %724 = vst.msk [vmem:[#allocation2 + $0x10] sm:$0xff] %vm297, %v642
        %725 = vst.msk [vmem:[#allocation2 + $0x18] sm:$0xff] %vm297, %v643
        %726 = vst.msk [vmem:[#allocation2 + $0x20] sm:$0xff] %vm297, %v674
        %727 = vst.msk [vmem:[#allocation2 + $0x28] sm:$0xff] %vm297, %v675
        %728 = vst.msk [vmem:[#allocation2 + $0x30] sm:$0xff] %vm297, %v706
        %729 = vst.msk [vmem:[#allocation2 + $0x38] sm:$0xff] %vm297, %v707
        %v730 = vld [vmem:[#allocation2] ss:$2 sm:$0xff]
        %v731 = vld [vmem:[%s307] ss:$2 sm:$0xff]
        %v732 = vld [vmem:[%s309] ss:$2 sm:$0xff]
        %v733 = vld [vmem:[%s311] ss:$2 sm:$0xff]
        %734 = vxpose.xlu0.b32.start [1/16] %v730, 128
        %735 = vxpose.xlu0.b32.cont [2/16] 0.0, 128
        %736 = vxpose.xlu0.b32.cont [3/16] 0.0, 128
        %737 = vxpose.xlu0.b32.cont [4/16] 0.0, 128
        %738 = vxpose.xlu0.b32.cont [5/16] 0.0, 128
        %739 = vxpose.xlu0.b32.cont [6/16] 0.0, 128
        %740 = vxpose.xlu0.b32.cont [7/16] 0.0, 128
        %741 = vxpose.xlu0.b32.cont [8/16] 0.0, 128
        %742 = vxpose.xlu0.b32.cont [9/16] 0.0, 128
        %743 = vxpose.xlu0.b32.cont [10/16] 0.0, 128
        %744 = vxpose.xlu0.b32.cont [11/16] 0.0, 128
        %745 = vxpose.xlu0.b32.cont [12/16] 0.0, 128
        %746 = vxpose.xlu0.b32.cont [13/16] 0.0, 128
        %747 = vxpose.xlu0.b32.cont [14/16] 0.0, 128
        %748 = vxpose.xlu0.b32.cont [15/16] 0.0, 128
        %749 = vxpose.xlu0.b32.end [16/16] 0.0, 128
        %v750 = vpop.trf.xlu0
        %v751 = vpop.trf.xlu0
        %v752 = vpop.trf.xlu0
        %v753 = vpop.trf.xlu0
        %v754 = vpop.trf.xlu0
        %v755 = vpop.trf.xlu0
        %v756 = vpop.trf.xlu0
        %v757 = vpop.trf.xlu0
        %v758 = vpop.trf.xlu0
        %v759 = vpop.trf.xlu0
        %v760 = vpop.trf.xlu0
        %v761 = vpop.trf.xlu0
        %v762 = vpop.trf.xlu0
        %v763 = vpop.trf.xlu0
        %v764 = vpop.trf.xlu0
        %v765 = vpop.trf.xlu0
        %766 = vxpose.xlu0.b32.start [1/16] %v731, 128
        %767 = vxpose.xlu0.b32.cont [2/16] 0.0, 128
        %768 = vxpose.xlu0.b32.cont [3/16] 0.0, 128
        %769 = vxpose.xlu0.b32.cont [4/16] 0.0, 128
        %770 = vxpose.xlu0.b32.cont [5/16] 0.0, 128
        %771 = vxpose.xlu0.b32.cont [6/16] 0.0, 128
        %772 = vxpose.xlu0.b32.cont [7/16] 0.0, 128
        %773 = vxpose.xlu0.b32.cont [8/16] 0.0, 128
        %774 = vxpose.xlu0.b32.cont [9/16] 0.0, 128
        %775 = vxpose.xlu0.b32.cont [10/16] 0.0, 128
        %776 = vxpose.xlu0.b32.cont [11/16] 0.0, 128
        %777 = vxpose.xlu0.b32.cont [12/16] 0.0, 128
        %778 = vxpose.xlu0.b32.cont [13/16] 0.0, 128
        %779 = vxpose.xlu0.b32.cont [14/16] 0.0, 128
        %780 = vxpose.xlu0.b32.cont [15/16] 0.0, 128
        %781 = vxpose.xlu0.b32.end [16/16] 0.0, 128
        %v782 = vpop.trf.xlu0
        %v783 = vpop.trf.xlu0
        %v784 = vpop.trf.xlu0
        %v785 = vpop.trf.xlu0
        %v786 = vpop.trf.xlu0
        %v787 = vpop.trf.xlu0
        %v788 = vpop.trf.xlu0
        %v789 = vpop.trf.xlu0
        %v790 = vpop.trf.xlu0
        %v791 = vpop.trf.xlu0
        %v792 = vpop.trf.xlu0
        %v793 = vpop.trf.xlu0
        %v794 = vpop.trf.xlu0
        %v795 = vpop.trf.xlu0
        %v796 = vpop.trf.xlu0
        %v797 = vpop.trf.xlu0
        %798 = vxpose.xlu0.b32.start [1/16] %v732, 128
        %799 = vxpose.xlu0.b32.cont [2/16] 0.0, 128
        %800 = vxpose.xlu0.b32.cont [3/16] 0.0, 128
        %801 = vxpose.xlu0.b32.cont [4/16] 0.0, 128
        %802 = vxpose.xlu0.b32.cont [5/16] 0.0, 128
        %803 = vxpose.xlu0.b32.cont [6/16] 0.0, 128
        %804 = vxpose.xlu0.b32.cont [7/16] 0.0, 128
        %805 = vxpose.xlu0.b32.cont [8/16] 0.0, 128
        %806 = vxpose.xlu0.b32.cont [9/16] 0.0, 128
        %807 = vxpose.xlu0.b32.cont [10/16] 0.0, 128
        %808 = vxpose.xlu0.b32.cont [11/16] 0.0, 128
        %809 = vxpose.xlu0.b32.cont [12/16] 0.0, 128
        %810 = vxpose.xlu0.b32.cont [13/16] 0.0, 128
        %811 = vxpose.xlu0.b32.cont [14/16] 0.0, 128
        %812 = vxpose.xlu0.b32.cont [15/16] 0.0, 128
        %813 = vxpose.xlu0.b32.end [16/16] 0.0, 128
        %v814 = vpop.trf.xlu0
        %v815 = vpop.trf.xlu0
        %v816 = vpop.trf.xlu0
        %v817 = vpop.trf.xlu0
        %v818 = vpop.trf.xlu0
        %v819 = vpop.trf.xlu0
        %v820 = vpop.trf.xlu0
        %v821 = vpop.trf.xlu0
        %v822 = vpop.trf.xlu0
        %v823 = vpop.trf.xlu0
        %v824 = vpop.trf.xlu0
        %v825 = vpop.trf.xlu0
        %v826 = vpop.trf.xlu0
        %v827 = vpop.trf.xlu0
        %v828 = vpop.trf.xlu0
        %v829 = vpop.trf.xlu0
        %830 = vxpose.xlu0.b32.start [1/16] %v733, 128
        %831 = vxpose.xlu0.b32.cont [2/16] 0.0, 128
        %832 = vxpose.xlu0.b32.cont [3/16] 0.0, 128
        %833 = vxpose.xlu0.b32.cont [4/16] 0.0, 128
        %834 = vxpose.xlu0.b32.cont [5/16] 0.0, 128
        %835 = vxpose.xlu0.b32.cont [6/16] 0.0, 128
        %836 = vxpose.xlu0.b32.cont [7/16] 0.0, 128
        %837 = vxpose.xlu0.b32.cont [8/16] 0.0, 128
        %838 = vxpose.xlu0.b32.cont [9/16] 0.0, 128
        %839 = vxpose.xlu0.b32.cont [10/16] 0.0, 128
        %840 = vxpose.xlu0.b32.cont [11/16] 0.0, 128
        %841 = vxpose.xlu0.b32.cont [12/16] 0.0, 128
        %842 = vxpose.xlu0.b32.cont [13/16] 0.0, 128
        %843 = vxpose.xlu0.b32.cont [14/16] 0.0, 128
        %844 = vxpose.xlu0.b32.cont [15/16] 0.0, 128
        %845 = vxpose.xlu0.b32.end [16/16] 0.0, 128
        %v846 = vpop.trf.xlu0
        %v847 = vpop.trf.xlu0
        %v848 = vpop.trf.xlu0
        %v849 = vpop.trf.xlu0
        %v850 = vpop.trf.xlu0
        %v851 = vpop.trf.xlu0
        %v852 = vpop.trf.xlu0
        %v853 = vpop.trf.xlu0
        %v854 = vpop.trf.xlu0
        %v855 = vpop.trf.xlu0
        %v856 = vpop.trf.xlu0
        %v857 = vpop.trf.xlu0
        %v858 = vpop.trf.xlu0
        %v859 = vpop.trf.xlu0
        %v860 = vpop.trf.xlu0
        %v861 = vpop.trf.xlu0
        %s862 = scalar_lea.vmem %s161, 64
        %863 = vst.msk [vmem:[%s862] sm:$0xff] %vm297, %v750
        %864 = vst.msk [vmem:[%s862 + $0x8] sm:$0xff] %vm297, %v782
        %865 = vst.msk [vmem:[%s862 + $0x10] sm:$0xff] %vm297, %v814
        %866 = vst.msk [vmem:[%s862 + $0x18] sm:$0xff] %vm297, %v846
        %v867 = vld [vmem:[%s445] ss:$2 sm:$0xff]
        %v868 = vld [vmem:[%s447] ss:$2 sm:$0xff]
        %v869 = vld [vmem:[%s449] ss:$2 sm:$0xff]
        %v870 = vld [vmem:[%s451] ss:$2 sm:$0xff]
        %871 = vxpose.xlu0.b32.start [1/16] %v867, 128
        %872 = vxpose.xlu0.b32.cont [2/16] 0.0, 128
        %873 = vxpose.xlu0.b32.cont [3/16] 0.0, 128
        %874 = vxpose.xlu0.b32.cont [4/16] 0.0, 128
        %875 = vxpose.xlu0.b32.cont [5/16] 0.0, 128
        %876 = vxpose.xlu0.b32.cont [6/16] 0.0, 128
        %877 = vxpose.xlu0.b32.cont [7/16] 0.0, 128
        %878 = vxpose.xlu0.b32.cont [8/16] 0.0, 128
        %879 = vxpose.xlu0.b32.cont [9/16] 0.0, 128
        %880 = vxpose.xlu0.b32.cont [10/16] 0.0, 128
        %881 = vxpose.xlu0.b32.cont [11/16] 0.0, 128
        %882 = vxpose.xlu0.b32.cont [12/16] 0.0, 128
        %883 = vxpose.xlu0.b32.cont [13/16] 0.0, 128
        %884 = vxpose.xlu0.b32.cont [14/16] 0.0, 128
        %885 = vxpose.xlu0.b32.cont [15/16] 0.0, 128
        %886 = vxpose.xlu0.b32.end [16/16] 0.0, 128
        %v887 = vpop.trf.xlu0
        %v888 = vpop.trf.xlu0
        %v889 = vpop.trf.xlu0
        %v890 = vpop.trf.xlu0
        %v891 = vpop.trf.xlu0
        %v892 = vpop.trf.xlu0
        %v893 = vpop.trf.xlu0
        %v894 = vpop.trf.xlu0
        %v895 = vpop.trf.xlu0
        %v896 = vpop.trf.xlu0
        %v897 = vpop.trf.xlu0
        %v898 = vpop.trf.xlu0
        %v899 = vpop.trf.xlu0
        %v900 = vpop.trf.xlu0
        %v901 = vpop.trf.xlu0
        %v902 = vpop.trf.xlu0
        %903 = vxpose.xlu0.b32.start [1/16] %v868, 128
        %904 = vxpose.xlu0.b32.cont [2/16] 0.0, 128
        %905 = vxpose.xlu0.b32.cont [3/16] 0.0, 128
        %906 = vxpose.xlu0.b32.cont [4/16] 0.0, 128
        %907 = vxpose.xlu0.b32.cont [5/16] 0.0, 128
        %908 = vxpose.xlu0.b32.cont [6/16] 0.0, 128
        %909 = vxpose.xlu0.b32.cont [7/16] 0.0, 128
        %910 = vxpose.xlu0.b32.cont [8/16] 0.0, 128
        %911 = vxpose.xlu0.b32.cont [9/16] 0.0, 128
        %912 = vxpose.xlu0.b32.cont [10/16] 0.0, 128
        %913 = vxpose.xlu0.b32.cont [11/16] 0.0, 128
        %914 = vxpose.xlu0.b32.cont [12/16] 0.0, 128
        %915 = vxpose.xlu0.b32.cont [13/16] 0.0, 128
        %916 = vxpose.xlu0.b32.cont [14/16] 0.0, 128
        %917 = vxpose.xlu0.b32.cont [15/16] 0.0, 128
        %918 = vxpose.xlu0.b32.end [16/16] 0.0, 128
        %v919 = vpop.trf.xlu0
        %v920 = vpop.trf.xlu0
        %v921 = vpop.trf.xlu0
        %v922 = vpop.trf.xlu0
        %v923 = vpop.trf.xlu0
        %v924 = vpop.trf.xlu0
        %v925 = vpop.trf.xlu0
        %v926 = vpop.trf.xlu0
        %v927 = vpop.trf.xlu0
        %v928 = vpop.trf.xlu0
        %v929 = vpop.trf.xlu0
        %v930 = vpop.trf.xlu0
        %v931 = vpop.trf.xlu0
        %v932 = vpop.trf.xlu0
        %v933 = vpop.trf.xlu0
        %v934 = vpop.trf.xlu0
        %935 = vxpose.xlu0.b32.start [1/16] %v869, 128
        %936 = vxpose.xlu0.b32.cont [2/16] 0.0, 128
        %937 = vxpose.xlu0.b32.cont [3/16] 0.0, 128
        %938 = vxpose.xlu0.b32.cont [4/16] 0.0, 128
        %939 = vxpose.xlu0.b32.cont [5/16] 0.0, 128
        %940 = vxpose.xlu0.b32.cont [6/16] 0.0, 128
        %941 = vxpose.xlu0.b32.cont [7/16] 0.0, 128
        %942 = vxpose.xlu0.b32.cont [8/16] 0.0, 128
        %943 = vxpose.xlu0.b32.cont [9/16] 0.0, 128
        %944 = vxpose.xlu0.b32.cont [10/16] 0.0, 128
        %945 = vxpose.xlu0.b32.cont [11/16] 0.0, 128
        %946 = vxpose.xlu0.b32.cont [12/16] 0.0, 128
        %947 = vxpose.xlu0.b32.cont [13/16] 0.0, 128
        %948 = vxpose.xlu0.b32.cont [14/16] 0.0, 128
        %949 = vxpose.xlu0.b32.cont [15/16] 0.0, 128
        %950 = vxpose.xlu0.b32.end [16/16] 0.0, 128
        %v951 = vpop.trf.xlu0
        %v952 = vpop.trf.xlu0
        %v953 = vpop.trf.xlu0
        %v954 = vpop.trf.xlu0
        %v955 = vpop.trf.xlu0
        %v956 = vpop.trf.xlu0
        %v957 = vpop.trf.xlu0
        %v958 = vpop.trf.xlu0
        %v959 = vpop.trf.xlu0
        %v960 = vpop.trf.xlu0
        %v961 = vpop.trf.xlu0
        %v962 = vpop.trf.xlu0
        %v963 = vpop.trf.xlu0
        %v964 = vpop.trf.xlu0
        %v965 = vpop.trf.xlu0
        %v966 = vpop.trf.xlu0
        %967 = vxpose.xlu0.b32.start [1/16] %v870, 128
        %968 = vxpose.xlu0.b32.cont [2/16] 0.0, 128
        %969 = vxpose.xlu0.b32.cont [3/16] 0.0, 128
        %970 = vxpose.xlu0.b32.cont [4/16] 0.0, 128
        %971 = vxpose.xlu0.b32.cont [5/16] 0.0, 128
        %972 = vxpose.xlu0.b32.cont [6/16] 0.0, 128
        %973 = vxpose.xlu0.b32.cont [7/16] 0.0, 128
        %974 = vxpose.xlu0.b32.cont [8/16] 0.0, 128
        %975 = vxpose.xlu0.b32.cont [9/16] 0.0, 128
        %976 = vxpose.xlu0.b32.cont [10/16] 0.0, 128
        %977 = vxpose.xlu0.b32.cont [11/16] 0.0, 128
        %978 = vxpose.xlu0.b32.cont [12/16] 0.0, 128
        %979 = vxpose.xlu0.b32.cont [13/16] 0.0, 128
        %980 = vxpose.xlu0.b32.cont [14/16] 0.0, 128
        %981 = vxpose.xlu0.b32.cont [15/16] 0.0, 128
        %982 = vxpose.xlu0.b32.end [16/16] 0.0, 128
        %v983 = vpop.trf.xlu0
        %v984 = vpop.trf.xlu0
        %v985 = vpop.trf.xlu0
        %v986 = vpop.trf.xlu0
        %v987 = vpop.trf.xlu0
        %v988 = vpop.trf.xlu0
        %v989 = vpop.trf.xlu0
        %v990 = vpop.trf.xlu0
        %v991 = vpop.trf.xlu0
        %v992 = vpop.trf.xlu0
        %v993 = vpop.trf.xlu0
        %v994 = vpop.trf.xlu0
        %v995 = vpop.trf.xlu0
        %v996 = vpop.trf.xlu0
        %v997 = vpop.trf.xlu0
        %v998 = vpop.trf.xlu0
        %s999 = scalar_lea.vmem %s161, 96
        %1000 = vst.msk [vmem:[%s999] sm:$0xff] %vm297, %v887
        %1001 = vst.msk [vmem:[%s999 + $0x8] sm:$0xff] %vm297, %v919
        %1002 = vst.msk [vmem:[%s999 + $0x10] sm:$0xff] %vm297, %v951
        %1003 = vst.msk [vmem:[%s999 + $0x18] sm:$0xff] %vm297, %v983
        %p1004 = scmp.lt.s32.totalorder %s19, 1
        %s1005 = scalar_select %p1004, %s19, 1
        %p1006 = scmp.lt.s32.totalorder %s20, 0
        %s1007 = scalar_select %p1006, %s20, 0
        %s1008 = smul.addr %s1005, 16
        %s1009 = sadd.s32 %s1007, %s1008
        %s1010 = smul.addr %s1009, 8
        %s1011 = scalar_lea.vmem %s1, %s1010
        // Predicated region
        $region29: #{tpu_custom_call.1} parent=23 // pred_check
          %p1012 = pneg %p75
        $region30: #{tpu_custom_call.1} parent=23 // pred_check_branch
          %1014 = sbr.rel (%p1012) target = $region32
        $region31: #{tpu_custom_call.1} parent=23 // pred_region
          _
        $region32: #{tpu_custom_call.1} parent=23 // pred_fallthru
          _
      $region24: #{tpu_custom_call.1} parent=5 // pred_fallthru
        _
      %p1015 = scmp.le.s32.totalorder 2, %s10
      // Predicated region
      $region33: #{tpu_custom_call.1} parent=5 // pred_check
        %p1016 = pneg %p1015
      $region34: #{tpu_custom_call.1} parent=5 // pred_check_branch
        %1018 = sbr.rel (%p1016) target = $region36
      $region35: #{tpu_custom_call.1} parent=5 // pred_region
        %s1019 = ssub.s32 %s10, 2
        // Predicated region
        $region37: #{tpu_custom_call.1} parent=35 // pred_check
          %p1020 = pneg %p81
        $region38: #{tpu_custom_call.1} parent=35 // pred_check_branch
          %1022 = sbr.rel (%p1020) target = $region40
        $region39: #{tpu_custom_call.1} parent=35 // pred_region
          %p1023 = scmp.lt.s32.totalorder %s21, 1
          %s1024 = scalar_select %p1023, %s21, 1
          %p1025 = scmp.lt.s32.totalorder %s22, 0
          %s1026 = scalar_select %p1025, %s22, 0
          %s1027 = smul.addr %s1024, 16
          %s1028 = sadd.s32 %s1026, %s1027
          %s1029 = smul.addr %s1028, 8
          %s1030 = scalar_lea.vmem %s1, %s1029
        $region40: #{tpu_custom_call.1} parent=35 // pred_fallthru
          _
      $region36: #{tpu_custom_call.1} parent=5 // pred_fallthru
        _
    $region6: #{tpu_custom_call.1} parent=1 // loop_footer
      %s14 = sadd.s32 1, %s10
    $region7: #{tpu_custom_call.1} parent=1 // loop_footer_branch
      %9 = sbr.rel target = $region3
    $region8: #{tpu_custom_call.1} parent=1 // loop_exit
      _
    %1031 = vsyncpa [#allocation4], 1
    %s1032 = scalar_lea.sflag [#allocation4], 1
    %1033 = vsyncpa %s1032, 1

// kernel: tpu_custom_call.1
$region0: #{tpu_custom_call.1}
  #allocation0 [shape = 'u32[]', space=smem, size = 0x4, offset = 0x4, fixed_abs, tag = 'smem constant byte address 0x4 - core index']
  #allocation1 [shape = 'u32[144,128]{1,0:T(1,128)}', space=vmem, size = 0x12000, scoped, tag = 'internal scratch']
  %s0 = inlined_call_operand.hbm [shape: f32[2,4,8,2,16], index: 0, kind: input, shape index: {}]
  %s1 = inlined_call_operand.vmem [shape: f32[2,16,8,8], index: 1, kind: output, shape index: {}]
  %s2 = sld [smem:[#allocation0]]
  $region41: #{tpu_custom_call.1} parent=0
    _
  %s4 = ssub.s32 1, %s2
  %s5 = scalar_select 0, %s4, %s2
  $region1: #{tpu_custom_call.1} parent=0
    #allocation2 [shape = 'u8[65536]{0}', space=vmem, size = 0x10000, scoped, tag = 'input window, operand 0']
    #allocation3 [shape = 's32[2]{0}', space=sflag, size = 0x8, scoped, tag = 'scoped memory for tpu_custom_call.1']
    %6 = vsyncpa [#allocation3], 0
    %s7 = scalar_lea.sflag [#allocation3], 1
    %8 = vsyncpa %s7, 0
    loop: start=0, step=1, limit=4
    $region2: #{tpu_custom_call.1} parent=1 // loop_pre_header
      _
    $region3: #{tpu_custom_call.1} parent=1 // loop_header
      %s10 = sphi 0, %s14
      %p11 = scmp.ge.s32.totalorder %s10, 4
      %s17 = sphi 0, %s29
      %s18 = sphi 0, %s25
      %s19 = sphi 0, %s17
      %s20 = sphi 0, %s18
      %s21 = sphi 0, %s19
      %s22 = sphi 0, %s20
      %s34 = sphi 0, %s36
      %s37 = sphi 0, %s34
      %s38 = sphi 0, %s37
      %s54 = sphi 0, %s38
      %s62 = sphi 0, %s64
      %s65 = sphi 0, %s62
      %s66 = sphi 0, %s65
      %s82 = sphi 0, %s66
    $region4: #{tpu_custom_call.1} parent=1 // loop_header_branch
      %13 = sbr.rel (%p11) target = $region8
    $region5: #{tpu_custom_call.1} parent=1 // loop_body
      %s15 = ssub.s32 %s10, 1
      %s16 = ssub.s32 %s10, 2
      %s23 = sadd.s32 1, %s18
      %p24 = scmp.ge.s32.totalorder %s23, 1
      %s25 = scalar_select %p24, 0, %s23
      %s26 = sadd.s32 1, %s17
      %s27 = scalar_select %p24, %s26, %s17
      %p28 = scmp.ge.s32.totalorder %s27, 2
      %s29 = scalar_select %p28, 0, %s27
      %s30 = ssub.s32 %s17, %s29
      %s31 = ssub.s32 %s18, %s25
      %s32 = sor.u32 %s30, %s31
      %p33 = scmp.eq.s32.totalorder %s32, 0
      %s35 = sadd.s32 %s34, 1
      %s36 = scalar_select %p33, %s34, %s35
      %p39 = pneg %p33
      %p40 = scmp.eq.s32.totalorder %s10, 1
      %p41 = por %p39, %p40
      %p42 = scmp.ne.s32.totalorder %s34, %s37
      %p43 = scmp.eq.s32.totalorder %s10, 0
      %p44 = por %p42, %p43
      %p45 = scmp.ne.s32.totalorder %s34, %s37
      %p46 = scmp.eq.s32.totalorder %s15, 1
      %p47 = por %p45, %p46
      %p48 = scmp.ne.s32.totalorder %s37, %s38
      %p49 = scmp.eq.s32.totalorder %s15, 0
      %p50 = por %p48, %p49
      %p51 = scmp.ne.s32.totalorder %s37, %s38
      %p52 = scmp.eq.s32.totalorder %s16, 1
      %p53 = por %p51, %p52
      %p55 = scmp.ne.s32.totalorder %s38, %s54
      %p56 = scmp.eq.s32.totalorder %s16, 0
      %p57 = por %p55, %p56
      %s58 = ssub.s32 %s17, %s29
      %s59 = ssub.s32 %s18, %s25
      %s60 = sor.u32 %s58, %s59
      %p61 = scmp.eq.s32.totalorder %s60, 0
      %s63 = sadd.s32 %s62, 1
      %s64 = scalar_select %p61, %s62, %s63
      %p67 = pneg %p61
      %p68 = scmp.eq.s32.totalorder %s10, 1
      %p69 = por %p67, %p68
      %p70 = scmp.ne.s32.totalorder %s62, %s65
      %p71 = scmp.eq.s32.totalorder %s10, 0
      %p72 = por %p70, %p71
      %p73 = scmp.ne.s32.totalorder %s62, %s65
      %p74 = scmp.eq.s32.totalorder %s15, 1
      %p75 = por %p73, %p74
      %p76 = scmp.ne.s32.totalorder %s65, %s66
      %p77 = scmp.eq.s32.totalorder %s15, 0
      %p78 = por %p76, %p77
      %p79 = scmp.ne.s32.totalorder %s65, %s66
      %p80 = scmp.eq.s32.totalorder %s16, 1
      %p81 = por %p79, %p80
      %p83 = scmp.ne.s32.totalorder %s66, %s82
      %p84 = scmp.eq.s32.totalorder %s16, 0
      %p85 = por %p83, %p84
      %p86 = scmp.le.s32.totalorder 1, %s10
      %p87 = scmp.lt.s32.totalorder %s10, 3
      %p88 = pnand %p86, %p87
      %p89 = pneg %p88
      // Predicated region
      $region9: #{tpu_custom_call.1} parent=5 // pred_check
        _
      $region10: #{tpu_custom_call.1} parent=5 // pred_check_branch
        %91 = sbr.rel (%p88) target = $region12
      $region11: #{tpu_custom_call.1} parent=5 // pred_region
        %s92 = ssub.s32 %s10, 1
      $region12: #{tpu_custom_call.1} parent=5 // pred_fallthru
        _
      %p93 = scmp.lt.s32.totalorder %s10, 2
      // Predicated region
      $region13: #{tpu_custom_call.1} parent=5 // pred_check
        %p94 = pneg %p93
      $region14: #{tpu_custom_call.1} parent=5 // pred_check_branch
        %96 = sbr.rel (%p94) target = $region16
      $region15: #{tpu_custom_call.1} parent=5 // pred_region
        // Predicated region
        $region17: #{tpu_custom_call.1} parent=15 // pred_check
          %p97 = pneg %p44
        $region18: #{tpu_custom_call.1} parent=15 // pred_check_branch
          %99 = sbr.rel (%p97) target = $region20
        $region19: #{tpu_custom_call.1} parent=15 // pred_region
          %s100 = sand.u32 %s34, 1
          %s101 = scalar_lea.sflag [#allocation3], %s100
          %s102 = sand.u32 %s34, 1
          %s103 = smul.addr %s102, 64
          %s104 = scalar_lea.vmem [#allocation2], %s103
          %s105 = smul.u32 8, %s18
          %s107 = ssub.s32 1024, 1024
          %108 = vsyncadd %s101, %s107
          %s109 = smul.addr %s17, 32
          %s110 = sadd.s32 %s105, %s109
          %s111 = smul.addr %s110, 32
          %s112 = scalar_lea.hbm %s0, %s111
          %s113 = sshll.u32 %s104, 4
          %s114 = int_to_ptr.vmem [resolvable:$true] %s113
          %119 = dma.hbm_to_vmem [thread:$0]  %s112, 1024, %s114, %s101, 32, 32, 2
        $region20: #{tpu_custom_call.1} parent=15 // pred_fallthru
          _
      $region16: #{tpu_custom_call.1} parent=5 // pred_fallthru
        _
      %p120 = scmp.le.s32.totalorder 1, %s10
      %p121 = scmp.lt.s32.totalorder %s10, 3
      %p122 = pnand %p120, %p121
      %p123 = pneg %p122
      // Predicated region
      $region21: #{tpu_custom_call.1} parent=5 // pred_check
        _
      $region22: #{tpu_custom_call.1} parent=5 // pred_check_branch
        %125 = sbr.rel (%p122) target = $region24
      $region23: #{tpu_custom_call.1} parent=5 // pred_region
        %s126 = ssub.s32 %s10, 1
        %s127 = sand.u32 %s37, 1
        %s128 = scalar_lea.sflag [#allocation3], %s127
        %s129 = sand.u32 %s37, 1
        %s130 = smul.addr %s129, 64
        %s131 = scalar_lea.vmem [#allocation2], %s130
        // Predicated region
        $region25: #{tpu_custom_call.1} parent=23 // pred_check
          %p132 = pneg %p50
        $region26: #{tpu_custom_call.1} parent=23 // pred_check_branch
          %134 = sbr.rel (%p132) target = $region28
        $region27: #{tpu_custom_call.1} parent=23 // pred_region
          %135 = dma.done %s128, 1024
        $region28: #{tpu_custom_call.1} parent=23 // pred_fallthru
          _
        %s136 = sand.u32 %s37, 1
        %s137 = scalar_lea.sflag [#allocation3], %s136
        %s138 = sand.u32 %s37, 1
        %s139 = smul.addr %s138, 64
        %s140 = scalar_lea.vmem [#allocation2], %s139
        %p141 = pneg %p50
        %p142 = pneg %p47
        %p143 = pneg %p78
        %p144 = pneg %p75
        %p145 = scmp.lt.s32.totalorder %s19, 1
        %s146 = scalar_select %p145, %s19, 1
        %p147 = scmp.lt.s32.totalorder %s20, 0
        %s148 = scalar_select %p147, %s20, 0
        %s149 = smul.addr %s146, 16
        %s150 = sadd.s32 %s148, %s149
        %s151 = smul.addr %s150, 8
        %s152 = scalar_lea.vmem %s1, %s151
        %s153 = smul.u32 8, %s20
        %p154 = scmp.lt.s32.totalorder %s19, 1
        %s155 = scalar_select %p154, %s19, 1
        %p156 = scmp.lt.s32.totalorder %s20, 0
        %s157 = scalar_select %p156, %s20, 0
        %s158 = smul.addr %s155, 16
        %s159 = sadd.s32 %s157, %s158
        %s160 = smul.addr %s159, 8
        %s161 = scalar_lea.vmem %s1, %s160
        %v162 = vlaneseq
        %v163 = vshrl.u32 %v162, 7
        %v164 = vadd.s32 %v163, 8
        %v165 = vlaneseq
        %v166 = vand.u32 %v165, 127
        %v167 = vmul.u32 %v166, 2
        %vm168 = vcmp.eq.s32.totalorder %v163, %v167
        %vm169 = vcmp.eq.s32.totalorder %v164, %v167
        %v170 = vsel %vm168, 1, 0
        %v171 = vsel %vm169, 1, 0
        %v172 = vcvt.s32.f32 %v170
        %v173 = vcvt.s32.f32 %v171
        %v174 = vadd.s32 %v167, 1
        %vm175 = vcmp.eq.s32.totalorder %v163, %v174
        %vm176 = vcmp.eq.s32.totalorder %v164, %v174
        %v177 = vsel %vm175, 1, 0
        %v178 = vsel %vm176, 1, 0
        %v179 = vcvt.s32.f32 %v177
        %v180 = vcvt.s32.f32 %v178
        %v181 = vld [vmem:[%s131] sm:$0x1]
        %v182 = vld [vmem:[%s131 + $0x2] sm:$0x1]
        %v183 = vld [vmem:[%s131 + $0x4] sm:$0x1]
        %v184 = vld [vmem:[%s131 + $0x6] sm:$0x1]
        %v185 = vld [vmem:[%s131 + $0x8] sm:$0x1]
        %v186 = vld [vmem:[%s131 + $0xa] sm:$0x1]
        %v187 = vld [vmem:[%s131 + $0xc] sm:$0x1]
        %v188 = vld [vmem:[%s131 + $0xe] sm:$0x1]
        %v189 = vld [vmem:[%s131 + $0x10] sm:$0x1]
        %v190 = vld [vmem:[%s131 + $0x12] sm:$0x1]
        %v191 = vld [vmem:[%s131 + $0x14] sm:$0x1]
        %v192 = vld [vmem:[%s131 + $0x16] sm:$0x1]
        %v193 = vld [vmem:[%s131 + $0x18] sm:$0x1]
        %v194 = vld [vmem:[%s131 + $0x1a] sm:$0x1]
        %v195 = vld [vmem:[%s131 + $0x1c] sm:$0x1]
        %v196 = vld [vmem:[%s131 + $0x1e] sm:$0x1]
        %v197 = vld [vmem:[%s131 + $0x20] sm:$0x1]
        %v198 = vld [vmem:[%s131 + $0x22] sm:$0x1]
        %v199 = vld [vmem:[%s131 + $0x24] sm:$0x1]
        %v200 = vld [vmem:[%s131 + $0x26] sm:$0x1]
        %v201 = vld [vmem:[%s131 + $0x28] sm:$0x1]
        %v202 = vld [vmem:[%s131 + $0x2a] sm:$0x1]
        %v203 = vld [vmem:[%s131 + $0x2c] sm:$0x1]
        %v204 = vld [vmem:[%s131 + $0x2e] sm:$0x1]
        %v205 = vld [vmem:[%s131 + $0x30] sm:$0x1]
        %v206 = vld [vmem:[%s131 + $0x32] sm:$0x1]
        %v207 = vld [vmem:[%s131 + $0x34] sm:$0x1]
        %v208 = vld [vmem:[%s131 + $0x36] sm:$0x1]
        %v209 = vld [vmem:[%s131 + $0x38] sm:$0x1]
        %v210 = vld [vmem:[%s131 + $0x3a] sm:$0x1]
        %v211 = vld [vmem:[%s131 + $0x3c] sm:$0x1]
        %v212 = vld [vmem:[%s131 + $0x3e] sm:$0x1]
        %v245 = vrot.slane %v182, 7
        %vm246 = vcmask 1041409
        %v247 = vsel %vm246, %v245, %v181
        %v248 = vrot.slane %v183, 6
        %vm249 = vcmask 1042434
        %v250 = vsel %vm249, %v248, %v247
        %v251 = vrot.slane %v184, 5
        %vm252 = vcmask 1043459
        %v253 = vsel %vm252, %v251, %v250
        %v254 = vrot.slane %v185, 4
        %vm255 = vcmask 1044484
        %v256 = vsel %vm255, %v254, %v253
        %v257 = vrot.slane %v186, 3
        %vm258 = vcmask 1045509
        %v259 = vsel %vm258, %v257, %v256
        %v260 = vrot.slane %v187, 2
        %vm261 = vcmask 1046534
        %v262 = vsel %vm261, %v260, %v259
        %v263 = vrot.slane %v188, 1
        %vm264 = vcmask 1047559
        %v265 = vsel %vm264, %v263, %v262
        %v266 = vrot.slane %v190, 7
        %v267 = vsel %vm246, %v266, %v189
        %v268 = vrot.slane %v191, 6
        %v269 = vsel %vm249, %v268, %v267
        %v270 = vrot.slane %v192, 5
        %v271 = vsel %vm252, %v270, %v269
        %v272 = vrot.slane %v193, 4
        %v273 = vsel %vm255, %v272, %v271
        %v274 = vrot.slane %v194, 3
        %v275 = vsel %vm258, %v274, %v273
        %v276 = vrot.slane %v195, 2
        %v277 = vsel %vm261, %v276, %v275
        %v278 = vrot.slane %v196, 1
        %v279 = vsel %vm264, %v278, %v277
        %v280 = vrot.slane %v198, 7
        %v281 = vsel %vm246, %v280, %v197
        %v282 = vrot.slane %v199, 6
        %v283 = vsel %vm249, %v282, %v281
        %v284 = vrot.slane %v200, 5
        %v285 = vsel %vm252, %v284, %v283
        %v286 = vrot.slane %v201, 4
        %v287 = vsel %vm255, %v286, %v285
        %v288 = vrot.slane %v202, 3
        %v289 = vsel %vm258, %v288, %v287
        %v290 = vrot.slane %v203, 2
        %v291 = vsel %vm261, %v290, %v289
        %v292 = vrot.slane %v204, 1
        %v293 = vsel %vm264, %v292, %v291
        %v294 = vrot.slane %v206, 7
        %v295 = vsel %vm246, %v294, %v205
        %v296 = vrot.slane %v207, 6
        %v297 = vsel %vm249, %v296, %v295
        %v298 = vrot.slane %v208, 5
        %v299 = vsel %vm252, %v298, %v297
        %v300 = vrot.slane %v209, 4
        %v301 = vsel %vm255, %v300, %v299
        %v302 = vrot.slane %v210, 3
        %v303 = vsel %vm258, %v302, %v301
        %v304 = vrot.slane %v211, 2
        %v305 = vsel %vm261, %v304, %v303
        %v306 = vrot.slane %v212, 1
        %v307 = vsel %vm264, %v306, %v305
        %vm308 = vcmask 130048
        %v309 = vsel %vm308, %v265, 0
        %v311 = vsel %vm308, %v279, 0
        %v313 = vsel %vm308, %v293, 0
        %v315 = vsel %vm308, %v307, 0
        %317 = vmatprep.subr.mxu0 0.0
        %318 = vmatpush1.msra.mxu0 %v172
        %319 = vmatprep.subr.mxu0 0.0
        %320 = vmatpush1.msra.mxu0 %v173
        %321 = vmatprep.subr.mxu0 0.0
        %322 = vmatpush1.msra.mxu0 0.0
        %323 = vmatprep.subr.mxu0 0.0
        %324 = vmatpush1.msra.mxu0 0.0
        %325 = vmatprep.subr.mxu0 0.0
        %326 = vmatpush1.msra.mxu0 0.0
        %327 = vmatprep.subr.mxu0 0.0
        %328 = vmatpush1.msra.mxu0 0.0
        %329 = vmatprep.subr.mxu0 0.0
        %330 = vmatpush1.msra.mxu0 0.0
        %331 = vmatprep.subr.mxu0 0.0
        %332 = vmatpush1.msra.mxu0 0.0
        %333 = vmatprep.subr.mxu0 0.0
        %334 = vmatpush1.msra.mxu0 0.0
        %335 = vmatprep.subr.mxu0 0.0
        %336 = vmatpush1.msra.mxu0 0.0
        %337 = vmatprep.subr.mxu0 0.0
        %338 = vmatpush1.msra.mxu0 0.0
        %339 = vmatprep.subr.mxu0 0.0
        %340 = vmatpush1.msra.mxu0 0.0
        %341 = vmatprep.subr.mxu0 0.0
        %342 = vmatpush1.msra.mxu0 0.0
        %343 = vmatprep.subr.mxu0 0.0
        %344 = vmatpush1.msra.mxu0 0.0
        %345 = vmatprep.subr.mxu0 0.0
        %346 = vmatpush1.msra.mxu0 0.0
        %347 = vmatprep.subr.mxu0 0.0
        %348 = vmatpush1.msra.mxu0 0.0
        %349 = vmatprep.subr.mxu0 0.0
        %350 = vmatpush1.msra.mxu0 0.0
        %351 = vmatprep.subr.mxu0 0.0
        %352 = vmatpush1.msra.mxu0 0.0
        %353 = vmatprep.subr.mxu0 0.0
        %354 = vmatpush1.msra.mxu0 0.0
        %355 = vmatprep.subr.mxu0 0.0
        %356 = vmatpush1.msra.mxu0 0.0
        %357 = vmatprep.subr.mxu0 0.0
        %358 = vmatpush1.msra.mxu0 0.0
        %359 = vmatprep.subr.mxu0 0.0
        %360 = vmatpush1.msra.mxu0 0.0
        %361 = vmatprep.subr.mxu0 0.0
        %362 = vmatpush1.msra.mxu0 0.0
        %363 = vmatprep.subr.mxu0 0.0
        %364 = vmatpush1.msra.mxu0 0.0
        %365 = vmatprep.subr.mxu0 0.0
        %366 = vmatpush1.msra.mxu0 0.0
        %367 = vmatprep.subr.mxu0 0.0
        %368 = vmatpush1.msra.mxu0 0.0
        %369 = vmatprep.subr.mxu0 0.0
        %370 = vmatpush1.msra.mxu0 0.0
        %371 = vmatprep.subr.mxu0 0.0
        %372 = vmatpush1.msra.mxu0 0.0
        %373 = vmatprep.subr.mxu0 0.0
        %374 = vmatpush1.msra.mxu0 0.0
        %375 = vmatprep.subr.mxu0 0.0
        %376 = vmatpush1.msra.mxu0 0.0
        %377 = vmatprep.subr.mxu0 0.0
        %378 = vmatpush1.msra.mxu0 0.0
        %379 = vmatprep.subr.mxu0 0.0
        %380 = vmatpush1.msra.mxu0 0.0
        %381 = vmatprep.mubr.f32.mxu0 0.0
        %382 = vmatmul.mubr.f32.gmra.mrb[0].mxu0 %v309
        %v383 = vpop.f32.mrb[0].mxu0
        %v384 = vadd.f32 0.0, %v383
        %v385 = vpop.f32.mrb[0].mxu0
        %386 = vmatprep.mubr.f32.mxu0 0.0
        %387 = vmatmul.mubr.f32.gmra.mrb[0].mxu0 %v311
        %v388 = vpop.f32.mrb[0].mxu0
        %v389 = vadd.f32 0.0, %v388
        %v390 = vpop.f32.mrb[0].mxu0
        %391 = vmatprep.mubr.f32.mxu0 0.0
        %392 = vmatmul.mubr.f32.gmra.mrb[0].mxu0 %v313
        %v393 = vpop.f32.mrb[0].mxu0
        %v394 = vadd.f32 0.0, %v393
        %v395 = vpop.f32.mrb[0].mxu0
        %396 = vmatprep.mubr.f32.mxu0 0.0
        %397 = vmatmul.mubr.f32.gmra.mrb[0].mxu0 %v315
        %v398 = vpop.f32.mrb[0].mxu0
        %v399 = vadd.f32 0.0, %v398
        %v400 = vpop.f32.mrb[0].mxu0
        %401 = vdwg.mxu0
        %vm402 = vcmask 64512
        %403 = vst.msk [vmem:[%s161] sm:$0xff] %vm402, %v384
        %404 = vst.msk [vmem:[%s161 + $0x8] sm:$0xff] %vm402, %v389
        %405 = vst.msk [vmem:[%s161 + $0x10] sm:$0xff] %vm402, %v394
        %406 = vst.msk [vmem:[%s161 + $0x18] sm:$0xff] %vm402, %v399
        %407 = vmatprep.subr.mxu0 0.0
        %408 = vmatpush1.msra.mxu0 %v179
        %409 = vmatprep.subr.mxu0 0.0
        %410 = vmatpush1.msra.mxu0 %v180
        %411 = vmatprep.subr.mxu0 0.0
        %412 = vmatpush1.msra.mxu0 0.0
        %413 = vmatprep.subr.mxu0 0.0
        %414 = vmatpush1.msra.mxu0 0.0
        %415 = vmatprep.subr.mxu0 0.0
        %416 = vmatpush1.msra.mxu0 0.0
        %417 = vmatprep.subr.mxu0 0.0
        %418 = vmatpush1.msra.mxu0 0.0
        %419 = vmatprep.subr.mxu0 0.0
        %420 = vmatpush1.msra.mxu0 0.0
        %421 = vmatprep.subr.mxu0 0.0
        %422 = vmatpush1.msra.mxu0 0.0
        %423 = vmatprep.subr.mxu0 0.0
        %424 = vmatpush1.msra.mxu0 0.0
        %425 = vmatprep.subr.mxu0 0.0
        %426 = vmatpush1.msra.mxu0 0.0
        %427 = vmatprep.subr.mxu0 0.0
        %428 = vmatpush1.msra.mxu0 0.0
        %429 = vmatprep.subr.mxu0 0.0
        %430 = vmatpush1.msra.mxu0 0.0
        %431 = vmatprep.subr.mxu0 0.0
        %432 = vmatpush1.msra.mxu0 0.0
        %433 = vmatprep.subr.mxu0 0.0
        %434 = vmatpush1.msra.mxu0 0.0
        %435 = vmatprep.subr.mxu0 0.0
        %436 = vmatpush1.msra.mxu0 0.0
        %437 = vmatprep.subr.mxu0 0.0
        %438 = vmatpush1.msra.mxu0 0.0
        %439 = vmatprep.subr.mxu0 0.0
        %440 = vmatpush1.msra.mxu0 0.0
        %441 = vmatprep.subr.mxu0 0.0
        %442 = vmatpush1.msra.mxu0 0.0
        %443 = vmatprep.subr.mxu0 0.0
        %444 = vmatpush1.msra.mxu0 0.0
        %445 = vmatprep.subr.mxu0 0.0
        %446 = vmatpush1.msra.mxu0 0.0
        %447 = vmatprep.subr.mxu0 0.0
        %448 = vmatpush1.msra.mxu0 0.0
        %449 = vmatprep.subr.mxu0 0.0
        %450 = vmatpush1.msra.mxu0 0.0
        %451 = vmatprep.subr.mxu0 0.0
        %452 = vmatpush1.msra.mxu0 0.0
        %453 = vmatprep.subr.mxu0 0.0
        %454 = vmatpush1.msra.mxu0 0.0
        %455 = vmatprep.subr.mxu0 0.0
        %456 = vmatpush1.msra.mxu0 0.0
        %457 = vmatprep.subr.mxu0 0.0
        %458 = vmatpush1.msra.mxu0 0.0
        %459 = vmatprep.subr.mxu0 0.0
        %460 = vmatpush1.msra.mxu0 0.0
        %461 = vmatprep.subr.mxu0 0.0
        %462 = vmatpush1.msra.mxu0 0.0
        %463 = vmatprep.subr.mxu0 0.0
        %464 = vmatpush1.msra.mxu0 0.0
        %465 = vmatprep.subr.mxu0 0.0
        %466 = vmatpush1.msra.mxu0 0.0
        %467 = vmatprep.subr.mxu0 0.0
        %468 = vmatpush1.msra.mxu0 0.0
        %469 = vmatprep.subr.mxu0 0.0
        %470 = vmatpush1.msra.mxu0 0.0
        %471 = vmatprep.mubr.f32.mxu0 0.0
        %472 = vmatmul.mubr.f32.gmra.mrb[0].mxu0 %v309
        %v473 = vpop.f32.mrb[0].mxu0
        %v474 = vadd.f32 0.0, %v473
        %v475 = vpop.f32.mrb[0].mxu0
        %476 = vmatprep.mubr.f32.mxu0 0.0
        %477 = vmatmul.mubr.f32.gmra.mrb[0].mxu0 %v311
        %v478 = vpop.f32.mrb[0].mxu0
        %v479 = vadd.f32 0.0, %v478
        %v480 = vpop.f32.mrb[0].mxu0
        %481 = vmatprep.mubr.f32.mxu0 0.0
        %482 = vmatmul.mubr.f32.gmra.mrb[0].mxu0 %v313
        %v483 = vpop.f32.mrb[0].mxu0
        %v484 = vadd.f32 0.0, %v483
        %v485 = vpop.f32.mrb[0].mxu0
        %486 = vmatprep.mubr.f32.mxu0 0.0
        %487 = vmatmul.mubr.f32.gmra.mrb[0].mxu0 %v315
        %v488 = vpop.f32.mrb[0].mxu0
        %v489 = vadd.f32 0.0, %v488
        %v490 = vpop.f32.mrb[0].mxu0
        %491 = vdwg.mxu0
        %s492 = scalar_lea.vmem %s161, 32
        %493 = vst.msk [vmem:[%s492] sm:$0xff] %vm402, %v474
        %494 = vst.msk [vmem:[%s492 + $0x8] sm:$0xff] %vm402, %v479
        %495 = vst.msk [vmem:[%s492 + $0x10] sm:$0xff] %vm402, %v484
        %496 = vst.msk [vmem:[%s492 + $0x18] sm:$0xff] %vm402, %v489
        %v497 = vld [vmem:[%s131 + $0x1] sm:$0x1]
        %v498 = vld [vmem:[%s131 + $0x3] sm:$0x1]
        %v499 = vld [vmem:[%s131 + $0x5] sm:$0x1]
        %v500 = vld [vmem:[%s131 + $0x7] sm:$0x1]
        %v501 = vld [vmem:[%s131 + $0x9] sm:$0x1]
        %v502 = vld [vmem:[%s131 + $0xb] sm:$0x1]
        %v503 = vld [vmem:[%s131 + $0xd] sm:$0x1]
        %v504 = vld [vmem:[%s131 + $0xf] sm:$0x1]
        %v505 = vld [vmem:[%s131 + $0x11] sm:$0x1]
        %v506 = vld [vmem:[%s131 + $0x13] sm:$0x1]
        %v507 = vld [vmem:[%s131 + $0x15] sm:$0x1]
        %v508 = vld [vmem:[%s131 + $0x17] sm:$0x1]
        %v509 = vld [vmem:[%s131 + $0x19] sm:$0x1]
        %v510 = vld [vmem:[%s131 + $0x1b] sm:$0x1]
        %v511 = vld [vmem:[%s131 + $0x1d] sm:$0x1]
        %v512 = vld [vmem:[%s131 + $0x1f] sm:$0x1]
        %v513 = vld [vmem:[%s131 + $0x21] sm:$0x1]
        %v514 = vld [vmem:[%s131 + $0x23] sm:$0x1]
        %v515 = vld [vmem:[%s131 + $0x25] sm:$0x1]
        %v516 = vld [vmem:[%s131 + $0x27] sm:$0x1]
        %v517 = vld [vmem:[%s131 + $0x29] sm:$0x1]
        %v518 = vld [vmem:[%s131 + $0x2b] sm:$0x1]
        %v519 = vld [vmem:[%s131 + $0x2d] sm:$0x1]
        %v520 = vld [vmem:[%s131 + $0x2f] sm:$0x1]
        %v521 = vld [vmem:[%s131 + $0x31] sm:$0x1]
        %v522 = vld [vmem:[%s131 + $0x33] sm:$0x1]
        %v523 = vld [vmem:[%s131 + $0x35] sm:$0x1]
        %v524 = vld [vmem:[%s131 + $0x37] sm:$0x1]
        %v525 = vld [vmem:[%s131 + $0x39] sm:$0x1]
        %v526 = vld [vmem:[%s131 + $0x3b] sm:$0x1]
        %v527 = vld [vmem:[%s131 + $0x3d] sm:$0x1]
        %v528 = vld [vmem:[%s131 + $0x3f] sm:$0x1]
        %v561 = vrot.slane %v498, 7
        %v562 = vsel %vm246, %v561, %v497
        %v563 = vrot.slane %v499, 6
        %v564 = vsel %vm249, %v563, %v562
        %v565 = vrot.slane %v500, 5
        %v566 = vsel %vm252, %v565, %v564
        %v567 = vrot.slane %v501, 4
        %v568 = vsel %vm255, %v567, %v566
        %v569 = vrot.slane %v502, 3
        %v570 = vsel %vm258, %v569, %v568
        %v571 = vrot.slane %v503, 2
        %v572 = vsel %vm261, %v571, %v570
        %v573 = vrot.slane %v504, 1
        %v574 = vsel %vm264, %v573, %v572
        %v575 = vrot.slane %v506, 7
        %v576 = vsel %vm246, %v575, %v505
        %v577 = vrot.slane %v507, 6
        %v578 = vsel %vm249, %v577, %v576
        %v579 = vrot.slane %v508, 5
        %v580 = vsel %vm252, %v579, %v578
        %v581 = vrot.slane %v509, 4
        %v582 = vsel %vm255, %v581, %v580
        %v583 = vrot.slane %v510, 3
        %v584 = vsel %vm258, %v583, %v582
        %v585 = vrot.slane %v511, 2
        %v586 = vsel %vm261, %v585, %v584
        %v587 = vrot.slane %v512, 1
        %v588 = vsel %vm264, %v587, %v586
        %v589 = vrot.slane %v514, 7
        %v590 = vsel %vm246, %v589, %v513
        %v591 = vrot.slane %v515, 6
        %v592 = vsel %vm249, %v591, %v590
        %v593 = vrot.slane %v516, 5
        %v594 = vsel %vm252, %v593, %v592
        %v595 = vrot.slane %v517, 4
        %v596 = vsel %vm255, %v595, %v594
        %v597 = vrot.slane %v518, 3
        %v598 = vsel %vm258, %v597, %v596
        %v599 = vrot.slane %v519, 2
        %v600 = vsel %vm261, %v599, %v598
        %v601 = vrot.slane %v520, 1
        %v602 = vsel %vm264, %v601, %v600
        %v603 = vrot.slane %v522, 7
        %v604 = vsel %vm246, %v603, %v521
        %v605 = vrot.slane %v523, 6
        %v606 = vsel %vm249, %v605, %v604
        %v607 = vrot.slane %v524, 5
        %v608 = vsel %vm252, %v607, %v606
        %v609 = vrot.slane %v525, 4
        %v610 = vsel %vm255, %v609, %v608
        %v611 = vrot.slane %v526, 3
        %v612 = vsel %vm258, %v611, %v610
        %v613 = vrot.slane %v527, 2
        %v614 = vsel %vm261, %v613, %v612
        %v615 = vrot.slane %v528, 1
        %v616 = vsel %vm264, %v615, %v614
        %v617 = vsel %vm308, %v574, 0
        %v619 = vsel %vm308, %v588, 0
        %v621 = vsel %vm308, %v602, 0
        %v623 = vsel %vm308, %v616, 0
        %625 = vmatprep.subr.mxu0 0.0
        %626 = vmatpush1.msra.mxu0 %v172
        %627 = vmatprep.subr.mxu0 0.0
        %628 = vmatpush1.msra.mxu0 %v173
        %629 = vmatprep.subr.mxu0 0.0
        %630 = vmatpush1.msra.mxu0 0.0
        %631 = vmatprep.subr.mxu0 0.0
        %632 = vmatpush1.msra.mxu0 0.0
        %633 = vmatprep.subr.mxu0 0.0
        %634 = vmatpush1.msra.mxu0 0.0
        %635 = vmatprep.subr.mxu0 0.0
        %636 = vmatpush1.msra.mxu0 0.0
        %637 = vmatprep.subr.mxu0 0.0
        %638 = vmatpush1.msra.mxu0 0.0
        %639 = vmatprep.subr.mxu0 0.0
        %640 = vmatpush1.msra.mxu0 0.0
        %641 = vmatprep.subr.mxu0 0.0
        %642 = vmatpush1.msra.mxu0 0.0
        %643 = vmatprep.subr.mxu0 0.0
        %644 = vmatpush1.msra.mxu0 0.0
        %645 = vmatprep.subr.mxu0 0.0
        %646 = vmatpush1.msra.mxu0 0.0
        %647 = vmatprep.subr.mxu0 0.0
        %648 = vmatpush1.msra.mxu0 0.0
        %649 = vmatprep.subr.mxu0 0.0
        %650 = vmatpush1.msra.mxu0 0.0
        %651 = vmatprep.subr.mxu0 0.0
        %652 = vmatpush1.msra.mxu0 0.0
        %653 = vmatprep.subr.mxu0 0.0
        %654 = vmatpush1.msra.mxu0 0.0
        %655 = vmatprep.subr.mxu0 0.0
        %656 = vmatpush1.msra.mxu0 0.0
        %657 = vmatprep.subr.mxu0 0.0
        %658 = vmatpush1.msra.mxu0 0.0
        %659 = vmatprep.subr.mxu0 0.0
        %660 = vmatpush1.msra.mxu0 0.0
        %661 = vmatprep.subr.mxu0 0.0
        %662 = vmatpush1.msra.mxu0 0.0
        %663 = vmatprep.subr.mxu0 0.0
        %664 = vmatpush1.msra.mxu0 0.0
        %665 = vmatprep.subr.mxu0 0.0
        %666 = vmatpush1.msra.mxu0 0.0
        %667 = vmatprep.subr.mxu0 0.0
        %668 = vmatpush1.msra.mxu0 0.0
        %669 = vmatprep.subr.mxu0 0.0
        %670 = vmatpush1.msra.mxu0 0.0
        %671 = vmatprep.subr.mxu0 0.0
        %672 = vmatpush1.msra.mxu0 0.0
        %673 = vmatprep.subr.mxu0 0.0
        %674 = vmatpush1.msra.mxu0 0.0
        %675 = vmatprep.subr.mxu0 0.0
        %676 = vmatpush1.msra.mxu0 0.0
        %677 = vmatprep.subr.mxu0 0.0
        %678 = vmatpush1.msra.mxu0 0.0
        %679 = vmatprep.subr.mxu0 0.0
        %680 = vmatpush1.msra.mxu0 0.0
        %681 = vmatprep.subr.mxu0 0.0
        %682 = vmatpush1.msra.mxu0 0.0
        %683 = vmatprep.subr.mxu0 0.0
        %684 = vmatpush1.msra.mxu0 0.0
        %685 = vmatprep.subr.mxu0 0.0
        %686 = vmatpush1.msra.mxu0 0.0
        %687 = vmatprep.subr.mxu0 0.0
        %688 = vmatpush1.msra.mxu0 0.0
        %689 = vmatprep.mubr.f32.mxu0 0.0
        %690 = vmatmul.mubr.f32.gmra.mrb[0].mxu0 %v617
        %v691 = vpop.f32.mrb[0].mxu0
        %v692 = vadd.f32 0.0, %v691
        %v693 = vpop.f32.mrb[0].mxu0
        %694 = vmatprep.mubr.f32.mxu0 0.0
        %695 = vmatmul.mubr.f32.gmra.mrb[0].mxu0 %v619
        %v696 = vpop.f32.mrb[0].mxu0
        %v697 = vadd.f32 0.0, %v696
        %v698 = vpop.f32.mrb[0].mxu0
        %699 = vmatprep.mubr.f32.mxu0 0.0
        %700 = vmatmul.mubr.f32.gmra.mrb[0].mxu0 %v621
        %v701 = vpop.f32.mrb[0].mxu0
        %v702 = vadd.f32 0.0, %v701
        %v703 = vpop.f32.mrb[0].mxu0
        %704 = vmatprep.mubr.f32.mxu0 0.0
        %705 = vmatmul.mubr.f32.gmra.mrb[0].mxu0 %v623
        %v706 = vpop.f32.mrb[0].mxu0
        %v707 = vadd.f32 0.0, %v706
        %v708 = vpop.f32.mrb[0].mxu0
        %709 = vdwg.mxu0
        %s710 = scalar_lea.vmem %s161, 64
        %711 = vst.msk [vmem:[%s710] sm:$0xff] %vm402, %v692
        %712 = vst.msk [vmem:[%s710 + $0x8] sm:$0xff] %vm402, %v697
        %713 = vst.msk [vmem:[%s710 + $0x10] sm:$0xff] %vm402, %v702
        %714 = vst.msk [vmem:[%s710 + $0x18] sm:$0xff] %vm402, %v707
        %715 = vmatprep.subr.mxu0 0.0
        %716 = vmatpush1.msra.mxu0 %v179
        %717 = vmatprep.subr.mxu0 0.0
        %718 = vmatpush1.msra.mxu0 %v180
        %719 = vmatprep.subr.mxu0 0.0
        %720 = vmatpush1.msra.mxu0 0.0
        %721 = vmatprep.subr.mxu0 0.0
        %722 = vmatpush1.msra.mxu0 0.0
        %723 = vmatprep.subr.mxu0 0.0
        %724 = vmatpush1.msra.mxu0 0.0
        %725 = vmatprep.subr.mxu0 0.0
        %726 = vmatpush1.msra.mxu0 0.0
        %727 = vmatprep.subr.mxu0 0.0
        %728 = vmatpush1.msra.mxu0 0.0
        %729 = vmatprep.subr.mxu0 0.0
        %730 = vmatpush1.msra.mxu0 0.0
        %731 = vmatprep.subr.mxu0 0.0
        %732 = vmatpush1.msra.mxu0 0.0
        %733 = vmatprep.subr.mxu0 0.0
        %734 = vmatpush1.msra.mxu0 0.0
        %735 = vmatprep.subr.mxu0 0.0
        %736 = vmatpush1.msra.mxu0 0.0
        %737 = vmatprep.subr.mxu0 0.0
        %738 = vmatpush1.msra.mxu0 0.0
        %739 = vmatprep.subr.mxu0 0.0
        %740 = vmatpush1.msra.mxu0 0.0
        %741 = vmatprep.subr.mxu0 0.0
        %742 = vmatpush1.msra.mxu0 0.0
        %743 = vmatprep.subr.mxu0 0.0
        %744 = vmatpush1.msra.mxu0 0.0
        %745 = vmatprep.subr.mxu0 0.0
        %746 = vmatpush1.msra.mxu0 0.0
        %747 = vmatprep.subr.mxu0 0.0
        %748 = vmatpush1.msra.mxu0 0.0
        %749 = vmatprep.subr.mxu0 0.0
        %750 = vmatpush1.msra.mxu0 0.0
        %751 = vmatprep.subr.mxu0 0.0
        %752 = vmatpush1.msra.mxu0 0.0
        %753 = vmatprep.subr.mxu0 0.0
        %754 = vmatpush1.msra.mxu0 0.0
        %755 = vmatprep.subr.mxu0 0.0
        %756 = vmatpush1.msra.mxu0 0.0
        %757 = vmatprep.subr.mxu0 0.0
        %758 = vmatpush1.msra.mxu0 0.0
        %759 = vmatprep.subr.mxu0 0.0
        %760 = vmatpush1.msra.mxu0 0.0
        %761 = vmatprep.subr.mxu0 0.0
        %762 = vmatpush1.msra.mxu0 0.0
        %763 = vmatprep.subr.mxu0 0.0
        %764 = vmatpush1.msra.mxu0 0.0
        %765 = vmatprep.subr.mxu0 0.0
        %766 = vmatpush1.msra.mxu0 0.0
        %767 = vmatprep.subr.mxu0 0.0
        %768 = vmatpush1.msra.mxu0 0.0
        %769 = vmatprep.subr.mxu0 0.0
        %770 = vmatpush1.msra.mxu0 0.0
        %771 = vmatprep.subr.mxu0 0.0
        %772 = vmatpush1.msra.mxu0 0.0
        %773 = vmatprep.subr.mxu0 0.0
        %774 = vmatpush1.msra.mxu0 0.0
        %775 = vmatprep.subr.mxu0 0.0
        %776 = vmatpush1.msra.mxu0 0.0
        %777 = vmatprep.subr.mxu0 0.0
        %778 = vmatpush1.msra.mxu0 0.0
        %779 = vmatprep.mubr.f32.mxu0 0.0
        %780 = vmatmul.mubr.f32.gmra.mrb[0].mxu0 %v617
        %v781 = vpop.f32.mrb[0].mxu0
        %v782 = vadd.f32 0.0, %v781
        %v783 = vpop.f32.mrb[0].mxu0
        %784 = vmatprep.mubr.f32.mxu0 0.0
        %785 = vmatmul.mubr.f32.gmra.mrb[0].mxu0 %v619
        %v786 = vpop.f32.mrb[0].mxu0
        %v787 = vadd.f32 0.0, %v786
        %v788 = vpop.f32.mrb[0].mxu0
        %789 = vmatprep.mubr.f32.mxu0 0.0
        %790 = vmatmul.mubr.f32.gmra.mrb[0].mxu0 %v621
        %v791 = vpop.f32.mrb[0].mxu0
        %v792 = vadd.f32 0.0, %v791
        %v793 = vpop.f32.mrb[0].mxu0
        %794 = vmatprep.mubr.f32.mxu0 0.0
        %795 = vmatmul.mubr.f32.gmra.mrb[0].mxu0 %v623
        %v796 = vpop.f32.mrb[0].mxu0
        %v797 = vadd.f32 0.0, %v796
        %v798 = vpop.f32.mrb[0].mxu0
        %799 = vdwg.mxu0
        %s800 = scalar_lea.vmem %s161, 96
        %801 = vst.msk [vmem:[%s800] sm:$0xff] %vm402, %v782
        %802 = vst.msk [vmem:[%s800 + $0x8] sm:$0xff] %vm402, %v787
        %803 = vst.msk [vmem:[%s800 + $0x10] sm:$0xff] %vm402, %v792
        %804 = vst.msk [vmem:[%s800 + $0x18] sm:$0xff] %vm402, %v797
        %p805 = scmp.lt.s32.totalorder %s19, 1
        %s806 = scalar_select %p805, %s19, 1
        %p807 = scmp.lt.s32.totalorder %s20, 0
        %s808 = scalar_select %p807, %s20, 0
        %s809 = smul.addr %s806, 16
        %s810 = sadd.s32 %s808, %s809
        %s811 = smul.addr %s810, 8
        %s812 = scalar_lea.vmem %s1, %s811
        // Predicated region
        $region29: #{tpu_custom_call.1} parent=23 // pred_check
          %p813 = pneg %p75
        $region30: #{tpu_custom_call.1} parent=23 // pred_check_branch
          %815 = sbr.rel (%p813) target = $region32
        $region31: #{tpu_custom_call.1} parent=23 // pred_region
          _
        $region32: #{tpu_custom_call.1} parent=23 // pred_fallthru
          _
      $region24: #{tpu_custom_call.1} parent=5 // pred_fallthru
        _
      %p816 = scmp.le.s32.totalorder 2, %s10
      // Predicated region
      $region33: #{tpu_custom_call.1} parent=5 // pred_check
        %p817 = pneg %p816
      $region34: #{tpu_custom_call.1} parent=5 // pred_check_branch
        %819 = sbr.rel (%p817) target = $region36
      $region35: #{tpu_custom_call.1} parent=5 // pred_region
        %s820 = ssub.s32 %s10, 2
        // Predicated region
        $region37: #{tpu_custom_call.1} parent=35 // pred_check
          %p821 = pneg %p81
        $region38: #{tpu_custom_call.1} parent=35 // pred_check_branch
          %823 = sbr.rel (%p821) target = $region40
        $region39: #{tpu_custom_call.1} parent=35 // pred_region
          %p824 = scmp.lt.s32.totalorder %s21, 1
          %s825 = scalar_select %p824, %s21, 1
          %p826 = scmp.lt.s32.totalorder %s22, 0
          %s827 = scalar_select %p826, %s22, 0
          %s828 = smul.addr %s825, 16
          %s829 = sadd.s32 %s827, %s828
          %s830 = smul.addr %s829, 8
          %s831 = scalar_lea.vmem %s1, %s830
        $region40: #{tpu_custom_call.1} parent=35 // pred_fallthru
          _
      $region36: #{tpu_custom_call.1} parent=5 // pred_fallthru
        _
    $region6: #{tpu_custom_call.1} parent=1 // loop_footer
      %s14 = sadd.s32 1, %s10
    $region7: #{tpu_custom_call.1} parent=1 // loop_footer_branch
      %9 = sbr.rel target = $region3
    $region8: #{tpu_custom_call.1} parent=1 // loop_exit
      _
    %832 = vsyncpa [#allocation3], 1
    %s833 = scalar_lea.sflag [#allocation3], 1
    %834 = vsyncpa %s833, 1

</llo_original>
